<compile_context>
chip_gen: v6e
topology: v6e:2x2x1
jax: 0.10.0
libtpu: 0.0.40
codegen_flags: <defaults>
</compile_context>

<pallas_src>
import functools

import jax
import jax.numpy as jnp
from jax.experimental import pallas as pl
from jax.experimental.pallas import tpu as pltpu

# Per the perf review, jax.lax.Precision.HIGH (bf16_3x) would halve the f32
# matmul-emulation passes on the MXU push slot and is likely sufficient for a
# K=32 contraction, but the review also requires re-validating it against the
# 1e-5 reference on hardware before committing.  Keep the exact 6-pass
# emulation by default; flip this constant after that validation.
_MXU_PRECISION = jax.lax.Precision.HIGHEST


def _mlp_norm_kernel(x_ref, w1_ref, b1_ref, w2_ref, b2_ref,
                     w3_ref, b3_ref, v_ref, o_ref):
    x = x_ref[...]          # (insize, Bt)  -- batch on lanes
    w1 = w1_ref[...]        # (32, insize)

    # Layer 1: K = insize (2) contraction as broadcast FMAs on the VPU.
    # (A K=2 MXU pass is pure padding/latency; this unrolled loop is exact f32.)
    h = b1_ref[...]                                    # (32, 1) -> broadcasts
    for k in range(x_ref.shape[0]):
        h = h + w1[:, k:k + 1] * x[k:k + 1, :]         # (32, Bt)
    h = jnp.maximum(h, 0.0)

    # Layers 2 & 3 on the MXU with N = Bt (lane-dense activations).
    h = jnp.dot(w2_ref[...], h, preferred_element_type=jnp.float32,
                precision=_MXU_PRECISION) + b2_ref[...]
    h = jnp.maximum(h, 0.0)                            # (32, Bt)

    h = jnp.dot(w3_ref[...], h, preferred_element_type=jnp.float32,
                precision=_MXU_PRECISION) + b3_ref[...]
    h = jnp.maximum(h, 0.0)                            # (16, Bt)

    # Fold the L2 normalization into the final projection:
    #   out = (v . h) / (||h|| + eps)   per batch column.
    # Both axis-0 (sublane) reductions run on the mostly idle MXU as
    # (1,16)x(16,Bt) matmuls instead of sublane roll+add trees on VALU/XLU.
    s = jnp.dot(v_ref[...], h, preferred_element_type=jnp.float32,
                precision=_MXU_PRECISION)                         # (1, Bt)
    ones_row = jnp.ones((1, h.shape[0]), dtype=jnp.float32)
    ss = jnp.dot(ones_row, h * h, preferred_element_type=jnp.float32,
                 precision=_MXU_PRECISION)                        # (1, Bt)
    norm = jnp.sqrt(ss)
    o_ref[...] = s / (norm + 1e-6)


def _pick_block_b(B):
    """Pick the batch (lane) tile size.

    Targets the 2K-16K range so each grid step's ~0.35us pipeline overhead is
    amortized over enough vector work, while keeping >= 2 grid steps whenever
    the batch allows it (so the "parallel" grid axis can use both of v7x's
    TensorCores).  Falls back to a single full-array tile for small or
    non-lane-aligned batches (a full-array block shape is always legal).
    """
    max_block = 16384   # ~13 MiB peak f32 temps -> fits the 48 MiB VMEM cap
    min_block = 2048    # below this, splitting only adds per-step overhead
    if B <= min_block or B % 128 != 0:
        return B
    upper = min(max_block, B // 2)          # B // 2 guarantees >= 2 grid steps
    upper -= upper % 128
    for cand in range(upper, min_block - 1, -128):
        if B % cand == 0:
            return cand
    return B


@functools.partial(jax.jit, static_argnames=("block_b",))
def d_mlp_norm_forward_fm(x_fm, params, block_b=None):
    """Native fast path.  x_fm: (insize, B) f32 -- feature-major, batch on lanes.

    params: weights (out, in), biases (out, 1), v (last_layer, 1).  Returns (B, 1).
    """
    insize, B = x_fm.shape
    if block_b is None:
        block_b = _pick_block_b(B)
    block_b = min(block_b, B)
    assert B % block_b == 0, "batch must be a multiple of block_b"
    assert block_b % 128 == 0 or block_b == B, "keep the batch tile lane-aligned"

    w1, b1 = params["w1"], params["b1"]
    w2, b2 = params["w2"], params["b2"]
    w3, b3 = params["w3"], params["b3"]
    v_row = params["v"].reshape(1, -1)      # (1, 16): free reshape, MXU epilogue LHS

    # Weights/biases are grid-invariant (constant index_map), so Pallas keeps a
    # single resident copy and does not re-DMA them per grid step.
    full = lambda a: pl.BlockSpec(a.shape, lambda i: (0,) * a.ndim)

    out_fm = pl.pallas_call(
        _mlp_norm_kernel,
        out_shape=jax.ShapeDtypeStruct((1, B), jnp.float32),
        grid_spec=pltpu.PrefetchScalarGridSpec(
            num_scalar_prefetch=0,
            grid=(B // block_b,),
            in_specs=[
                pl.BlockSpec((insize, block_b), lambda i: (0, i)),  # x tile
                full(w1), full(b1),
                full(w2), full(b2),
                full(w3), full(b3),
                full(v_row),
            ],
            out_specs=pl.BlockSpec((1, block_b), lambda i: (0, i)),
        ),
        compiler_params=pltpu.CompilerParams(
            # "parallel" lets the grid shard across v7x's two TensorCores.
            dimension_semantics=("parallel",),
            # Explicit VMEM cap: above v5e's 16 MiB scoped default (so the 16K
            # tiles compile there) and safely below v7x's 64 MiB physical VMEM.
            vmem_limit_bytes=48 * 1024 * 1024,
        ),
    )(x_fm, w1, b1, w2, b2, w3, b3, v_row)
    return out_fm.reshape(B, 1)             # (1, B) -> (B, 1): free reshape


def d_mlp_norm_forward(x, params, block_b=None):
    """Batch-major entry matching the PyTorch module: x (B, insize) -> (B, 1).

    NOTE: the x.T here is a separate XLA copy kernel (~2.3x the Pallas kernel's
    own HBM traffic on x).  In production, have the producer emit x feature-
    major (insize, B) and call d_mlp_norm_forward_fm directly.
    """
    return d_mlp_norm_forward_fm(x.T, params, block_b=block_b)


def init_params(key, insize=2, layer_sizes=(32, 32, 16)):
    """Synthetic PyTorch-Linear-style params, stored transposed: W (out, in), b (out, 1)."""
    params = {}
    sizes_in = (insize,) + tuple(layer_sizes[:-1])
    sizes_out = tuple(layer_sizes)
    keys = jax.random.split(key, 2 * len(sizes_out) + 1)
    for ix, (si, so) in enumerate(zip(sizes_in, sizes_out)):
        bound = 1.0 / jnp.sqrt(si)
        params[f"w{ix + 1}"] = jax.random.uniform(
            keys[2 * ix], (so, si), jnp.float32, -bound, bound)
        params[f"b{ix + 1}"] = jax.random.uniform(
            keys[2 * ix + 1], (so, 1), jnp.float32, -bound, bound)
    bound = 1.0 / jnp.sqrt(layer_sizes[-1])
    params["v"] = jax.random.uniform(
        keys[-1], (layer_sizes[-1], 1), jnp.float32, -bound, bound)
    return params


def reference_forward(x, params):
    """Plain-JAX reference with near-exact f32 matmuls (matches PyTorch f32 math)."""
    hi = jax.lax.Precision.HIGHEST
    h = jnp.maximum(jnp.dot(x, params["w1"].T, precision=hi) + params["b1"].T, 0.0)
    h = jnp.maximum(jnp.dot(h, params["w2"].T, precision=hi) + params["b2"].T, 0.0)
    h = jnp.maximum(jnp.dot(h, params["w3"].T, precision=hi) + params["b3"].T, 0.0)
    norm = jnp.linalg.norm(h, axis=-1, keepdims=True)
    return jnp.dot(h / (norm + 1e-6), params["v"], precision=hi)


if __name__ == "__main__":
    key = jax.random.PRNGKey(0)
    k_param, k_x1, k_x2 = jax.random.split(key, 3)

    insize = 2
    params = init_params(k_param, insize=insize, layer_sizes=(32, 32, 16))

    # Small batch: single full-array lane-dense tile, grid = (1,).
    B1 = 256
    x1_fm = jax.random.normal(k_x1, (insize, B1), jnp.float32)   # producer emits feature-major
    out1 = jax.block_until_ready(d_mlp_norm_forward_fm(x1_fm, params))
    ref1 = reference_forward(x1_fm.T, params)
    assert out1.shape == (B1, 1)
    assert jnp.allclose(out1, ref1, atol=1e-5, rtol=1e-5), "mismatch vs reference (B=256)"

    # Larger batch: exercises the multi-step pipelined grid (block_b=2048, grid=(2,)).
    B2 = 4096
    x2_fm = jax.random.normal(k_x2, (insize, B2), jnp.float32)
    out2 = jax.block_until_ready(d_mlp_norm_forward_fm(x2_fm, params))
    ref2 = reference_forward(x2_fm.T, params)
    assert out2.shape == (B2, 1)
    assert jnp.allclose(out2, ref2, atol=1e-5, rtol=1e-5), "mismatch vs reference (B=4096)"

    # Batch-major convenience wrapper (PyTorch-layout input) stays available.
    out1b = jax.block_until_ready(d_mlp_norm_forward(x1_fm.T, params))
    assert jnp.allclose(out1b, ref1, atol=1e-5, rtol=1e-5), "mismatch vs reference (batch-major)"

    # TODO(synk): LayerNorm / LeakyReLU / Sigmoid branches of the module are
    # unused under the default config (normalization=None, nonlin='ReLU') and
    # are not implemented here.
    print("KERNEL_OK")
</pallas_src>

<mosaic_0001>
module attributes {stable_mosaic.version = 11 : i64} {
  func.func @_mlp_norm_kernel(%arg0: i32, %arg1: memref<2x256xf32, #tpu.memory_space<vmem>>, %arg2: memref<32x2xf32, #tpu.memory_space<vmem>>, %arg3: memref<32x1xf32, #tpu.memory_space<vmem>>, %arg4: memref<32x32xf32, #tpu.memory_space<vmem>>, %arg5: memref<32x1xf32, #tpu.memory_space<vmem>>, %arg6: memref<16x32xf32, #tpu.memory_space<vmem>>, %arg7: memref<16x1xf32, #tpu.memory_space<vmem>>, %arg8: memref<1x16xf32, #tpu.memory_space<vmem>>, %arg9: memref<1x256xf32, #tpu.memory_space<vmem>>) attributes {dimension_semantics = [#tpu.dimension_semantics<parallel>], iteration_bounds = array<i64: 1>, scalar_prefetch = 0 : i64, scratch_operands = 0 : i64, tpu.core_type = #tpu.core_type<tc>, window_params = [{transform_indices = @transform_0, window_bounds = array<i64: 2, 256>}, {pipeline_mode = #tpu.pipeline_mode<synchronous>, transform_indices = @transform_1, window_bounds = array<i64: 32, 2>}, {pipeline_mode = #tpu.pipeline_mode<synchronous>, transform_indices = @transform_2, window_bounds = array<i64: 32, 1>}, {pipeline_mode = #tpu.pipeline_mode<synchronous>, transform_indices = @transform_3, window_bounds = array<i64: 32, 32>}, {pipeline_mode = #tpu.pipeline_mode<synchronous>, transform_indices = @transform_4, window_bounds = array<i64: 32, 1>}, {pipeline_mode = #tpu.pipeline_mode<synchronous>, transform_indices = @transform_5, window_bounds = array<i64: 16, 32>}, {pipeline_mode = #tpu.pipeline_mode<synchronous>, transform_indices = @transform_6, window_bounds = array<i64: 16, 1>}, {pipeline_mode = #tpu.pipeline_mode<synchronous>, transform_indices = @transform_7, window_bounds = array<i64: 1, 16>}, {transform_indices = @transform_8, window_bounds = array<i64: 1, 256>}]} {
    %c0 = arith.constant 0 : index
    %c0_0 = arith.constant 0 : index
    %0 = vector.load %arg1[%c0, %c0_0] : memref<2x256xf32, #tpu.memory_space<vmem>>, vector<2x256xf32>
    %c0_1 = arith.constant 0 : index
    %c0_2 = arith.constant 0 : index
    %1 = vector.load %arg2[%c0_1, %c0_2] : memref<32x2xf32, #tpu.memory_space<vmem>>, vector<32x2xf32>
    %c0_3 = arith.constant 0 : index
    %c0_4 = arith.constant 0 : index
    %2 = vector.load %arg3[%c0_3, %c0_4] : memref<32x1xf32, #tpu.memory_space<vmem>>, vector<32x1xf32>
    %3 = vector.extract_strided_slice %1 {offsets = [0, 0], sizes = [32, 1], strides = [1, 1]} : vector<32x2xf32> to vector<32x1xf32>
    %4 = vector.extract_strided_slice %0 {offsets = [0, 0], sizes = [1, 256], strides = [1, 1]} : vector<2x256xf32> to vector<1x256xf32>
    %5 = vector.broadcast %3 : vector<32x1xf32> to vector<32x256xf32>
    %6 = vector.broadcast %4 : vector<1x256xf32> to vector<32x256xf32>
    %7 = arith.mulf %5, %6 : vector<32x256xf32>
    %8 = vector.broadcast %2 : vector<32x1xf32> to vector<32x256xf32>
    %9 = arith.addf %8, %7 : vector<32x256xf32>
    %10 = vector.extract_strided_slice %1 {offsets = [0, 1], sizes = [32, 1], strides = [1, 1]} : vector<32x2xf32> to vector<32x1xf32>
    %11 = vector.extract_strided_slice %0 {offsets = [1, 0], sizes = [1, 256], strides = [1, 1]} : vector<2x256xf32> to vector<1x256xf32>
    %12 = vector.broadcast %10 : vector<32x1xf32> to vector<32x256xf32>
    %13 = vector.broadcast %11 : vector<1x256xf32> to vector<32x256xf32>
    %14 = arith.mulf %12, %13 : vector<32x256xf32>
    %15 = arith.addf %9, %14 : vector<32x256xf32>
    %cst = arith.constant 0.000000e+00 : f32
    %16 = vector.broadcast %cst : f32 to vector<32x256xf32>
    %17 = arith.maximumf %15, %16 : vector<32x256xf32>
    %c0_5 = arith.constant 0 : index
    %c0_6 = arith.constant 0 : index
    %18 = vector.load %arg4[%c0_5, %c0_6] : memref<32x32xf32, #tpu.memory_space<vmem>>, vector<32x32xf32>
    %cst_7 = arith.constant dense<0.000000e+00> : vector<32x256xf32>
    %19 = tpu.matmul %18, %17, %cst_7 {dimension_numbers = #tpu.dot_dimension_numbers<[1], [0], [0], [1], [0, 0, 1, 1], [], []>, precision = #tpu.contract_precision<fp32>} : vector<32x32xf32>, vector<32x256xf32>, vector<32x256xf32> -> vector<32x256xf32>
    %c0_8 = arith.constant 0 : index
    %c0_9 = arith.constant 0 : index
    %20 = vector.load %arg5[%c0_8, %c0_9] : memref<32x1xf32, #tpu.memory_space<vmem>>, vector<32x1xf32>
    %21 = vector.broadcast %20 : vector<32x1xf32> to vector<32x256xf32>
    %22 = arith.addf %19, %21 : vector<32x256xf32>
    %cst_10 = arith.constant 0.000000e+00 : f32
    %23 = vector.broadcast %cst_10 : f32 to vector<32x256xf32>
    %24 = arith.maximumf %22, %23 : vector<32x256xf32>
    %c0_11 = arith.constant 0 : index
    %c0_12 = arith.constant 0 : index
    %25 = vector.load %arg6[%c0_11, %c0_12] : memref<16x32xf32, #tpu.memory_space<vmem>>, vector<16x32xf32>
    %cst_13 = arith.constant dense<0.000000e+00> : vector<16x256xf32>
    %26 = tpu.matmul %25, %24, %cst_13 {dimension_numbers = #tpu.dot_dimension_numbers<[1], [0], [0], [1], [0, 0, 1, 1], [], []>, precision = #tpu.contract_precision<fp32>} : vector<16x32xf32>, vector<32x256xf32>, vector<16x256xf32> -> vector<16x256xf32>
    %c0_14 = arith.constant 0 : index
    %c0_15 = arith.constant 0 : index
    %27 = vector.load %arg7[%c0_14, %c0_15] : memref<16x1xf32, #tpu.memory_space<vmem>>, vector<16x1xf32>
    %28 = vector.broadcast %27 : vector<16x1xf32> to vector<16x256xf32>
    %29 = arith.addf %26, %28 : vector<16x256xf32>
    %cst_16 = arith.constant 0.000000e+00 : f32
    %30 = vector.broadcast %cst_16 : f32 to vector<16x256xf32>
    %31 = arith.maximumf %29, %30 : vector<16x256xf32>
    %c0_17 = arith.constant 0 : index
    %c0_18 = arith.constant 0 : index
    %32 = vector.load %arg8[%c0_17, %c0_18] : memref<1x16xf32, #tpu.memory_space<vmem>>, vector<1x16xf32>
    %cst_19 = arith.constant dense<0.000000e+00> : vector<1x256xf32>
    %33 = tpu.matmul %32, %31, %cst_19 {dimension_numbers = #tpu.dot_dimension_numbers<[1], [0], [0], [1], [0, 0, 1, 1], [], []>, precision = #tpu.contract_precision<fp32>} : vector<1x16xf32>, vector<16x256xf32>, vector<1x256xf32> -> vector<1x256xf32>
    %cst_20 = arith.constant 1.000000e+00 : f32
    %34 = vector.broadcast %cst_20 : f32 to vector<1x16xf32>
    %35 = arith.mulf %31, %31 : vector<16x256xf32>
    %cst_21 = arith.constant dense<0.000000e+00> : vector<1x256xf32>
    %36 = tpu.matmul %34, %35, %cst_21 {dimension_numbers = #tpu.dot_dimension_numbers<[1], [0], [0], [1], [0, 0, 1, 1], [], []>, precision = #tpu.contract_precision<fp32>} : vector<1x16xf32>, vector<16x256xf32>, vector<1x256xf32> -> vector<1x256xf32>
    %37 = math.sqrt %36 : vector<1x256xf32>
    %cst_22 = arith.constant 9.99999997E-7 : f32
    %38 = vector.broadcast %cst_22 : f32 to vector<1x256xf32>
    %39 = arith.addf %37, %38 : vector<1x256xf32>
    %40 = arith.divf %33, %39 : vector<1x256xf32>
    %c0_23 = arith.constant 0 : index
    %c0_24 = arith.constant 0 : index
    %41 = vector.load %arg9[%c0_23, %c0_24] : memref<1x256xf32, #tpu.memory_space<vmem>>, vector<1x256xf32>
    tpu.vector_store %arg9[%c0_23, %c0_24], %40 {strides = array<i32>} : memref<1x256xf32, #tpu.memory_space<vmem>>, vector<1x256xf32>,
    return
  }
  func.func @transform_0(%arg0: i32) -> (i32, i32) {
    %c0_i32 = arith.constant 0 : i32
    %c0_i32_0 = arith.constant 0 : i32
    return %c0_i32, %arg0 : i32, i32
  }
  func.func @transform_1(%arg0: i32) -> (i32, i32) {
    %c0_i32 = arith.constant 0 : i32
    %c0_i32_0 = arith.constant 0 : i32
    %c0_i32_1 = arith.constant 0 : i32
    return %c0_i32, %c0_i32_0 : i32, i32
  }
  func.func @transform_2(%arg0: i32) -> (i32, i32) {
    %c0_i32 = arith.constant 0 : i32
    %c0_i32_0 = arith.constant 0 : i32
    %c0_i32_1 = arith.constant 0 : i32
    return %c0_i32, %c0_i32_0 : i32, i32
  }
  func.func @transform_3(%arg0: i32) -> (i32, i32) {
    %c0_i32 = arith.constant 0 : i32
    %c0_i32_0 = arith.constant 0 : i32
    %c0_i32_1 = arith.constant 0 : i32
    return %c0_i32, %c0_i32_0 : i32, i32
  }
  func.func @transform_4(%arg0: i32) -> (i32, i32) {
    %c0_i32 = arith.constant 0 : i32
    %c0_i32_0 = arith.constant 0 : i32
    %c0_i32_1 = arith.constant 0 : i32
    return %c0_i32, %c0_i32_0 : i32, i32
  }
  func.func @transform_5(%arg0: i32) -> (i32, i32) {
    %c0_i32 = arith.constant 0 : i32
    %c0_i32_0 = arith.constant 0 : i32
    %c0_i32_1 = arith.constant 0 : i32
    return %c0_i32, %c0_i32_0 : i32, i32
  }
  func.func @transform_6(%arg0: i32) -> (i32, i32) {
    %c0_i32 = arith.constant 0 : i32
    %c0_i32_0 = arith.constant 0 : i32
    %c0_i32_1 = arith.constant 0 : i32
    return %c0_i32, %c0_i32_0 : i32, i32
  }
  func.func @transform_7(%arg0: i32) -> (i32, i32) {
    %c0_i32 = arith.constant 0 : i32
    %c0_i32_0 = arith.constant 0 : i32
    %c0_i32_1 = arith.constant 0 : i32
    return %c0_i32, %c0_i32_0 : i32, i32
  }
  func.func @transform_8(%arg0: i32) -> (i32, i32) {
    %c0_i32 = arith.constant 0 : i32
    %c0_i32_0 = arith.constant 0 : i32
    return %c0_i32, %arg0 : i32, i32
  }
}

</mosaic_0001>

<llo_original>
// kernel: d_mlp_norm_forward_fm.1
$region0: #{d_mlp_norm_forward_fm.1}
  #allocation0 [shape = 'u32[]', space=smem, size = 0x4, offset = 0x4, fixed_abs, tag = 'smem constant byte address 0x4 - core index']
  #allocation1 [shape = 'u32[144,128]{1,0:T(1,128)}', space=vmem, size = 0x12000, scoped, tag = 'internal scratch']
  %s0 = inlined_call_operand.vmem [shape: f32[2,256], index: 0, kind: input, shape index: {}]
  %s1 = inlined_call_operand.vmem [shape: f32[32,2], index: 1, kind: input, shape index: {}]
  %s2 = inlined_call_operand.vmem [shape: f32[32,1], index: 2, kind: input, shape index: {}]
  %s3 = inlined_call_operand.vmem [shape: f32[32,32], index: 3, kind: input, shape index: {}]
  %s4 = inlined_call_operand.vmem [shape: f32[32,1], index: 4, kind: input, shape index: {}]
  %s5 = inlined_call_operand.vmem [shape: f32[16,32], index: 5, kind: input, shape index: {}]
  %s6 = inlined_call_operand.vmem [shape: f32[16,1], index: 6, kind: input, shape index: {}]
  %s7 = inlined_call_operand.vmem [shape: f32[1,16], index: 7, kind: input, shape index: {}]
  %s8 = inlined_call_operand.hbm [shape: f32[1,256], index: 8, kind: output, shape index: {}]
  %s9 = sld [smem:[#allocation0]]
  $region42: #{d_mlp_norm_forward_fm.1} parent=0
    _
  %s11 = ssub.s32 1, %s9
  %s12 = scalar_select 0, %s11, %s9
  $region1: #{d_mlp_norm_forward_fm.1} parent=0
    #allocation2 [shape = 'u8[1024]{0}', space=vmem, size = 0x400, scoped, tag = 'output window, operand 0, single buffered']
    #allocation3 [shape = 's32[1]{0}', space=sflag, size = 0x4, scoped, tag = 'scoped memory for d_mlp_norm_forward_fm.1']
    %13 = vsyncpa [#allocation3], 0
    // Predicated region
    $region2: #{d_mlp_norm_forward_fm.1} parent=1 // pred_check
      _
    $region3: #{d_mlp_norm_forward_fm.1} parent=1 // pred_check_branch
      %15 = sbr.rel (0) target = $region5
    $region4: #{d_mlp_norm_forward_fm.1} parent=1 // pred_region
      _
    $region5: #{d_mlp_norm_forward_fm.1} parent=1 // pred_fallthru
      _
    // Predicated region
    $region6: #{d_mlp_norm_forward_fm.1} parent=1 // pred_check
      _
    $region7: #{d_mlp_norm_forward_fm.1} parent=1 // pred_check_branch
      %17 = sbr.rel (0) target = $region9
    $region8: #{d_mlp_norm_forward_fm.1} parent=1 // pred_region
      _
    $region9: #{d_mlp_norm_forward_fm.1} parent=1 // pred_fallthru
      _
    // Predicated region
    $region10: #{d_mlp_norm_forward_fm.1} parent=1 // pred_check
      _
    $region11: #{d_mlp_norm_forward_fm.1} parent=1 // pred_check_branch
      %19 = sbr.rel (0) target = $region13
    $region12: #{d_mlp_norm_forward_fm.1} parent=1 // pred_region
      _
    $region13: #{d_mlp_norm_forward_fm.1} parent=1 // pred_fallthru
      _
    // Predicated region
    $region14: #{d_mlp_norm_forward_fm.1} parent=1 // pred_check
      _
    $region15: #{d_mlp_norm_forward_fm.1} parent=1 // pred_check_branch
      %21 = sbr.rel (0) target = $region17
    $region16: #{d_mlp_norm_forward_fm.1} parent=1 // pred_region
      _
    $region17: #{d_mlp_norm_forward_fm.1} parent=1 // pred_fallthru
      _
    // Predicated region
    $region18: #{d_mlp_norm_forward_fm.1} parent=1 // pred_check
      _
    $region19: #{d_mlp_norm_forward_fm.1} parent=1 // pred_check_branch
      %23 = sbr.rel (0) target = $region21
    $region20: #{d_mlp_norm_forward_fm.1} parent=1 // pred_region
      _
    $region21: #{d_mlp_norm_forward_fm.1} parent=1 // pred_fallthru
      _
    // Predicated region
    $region22: #{d_mlp_norm_forward_fm.1} parent=1 // pred_check
      _
    $region23: #{d_mlp_norm_forward_fm.1} parent=1 // pred_check_branch
      %25 = sbr.rel (0) target = $region25
    $region24: #{d_mlp_norm_forward_fm.1} parent=1 // pred_region
      _
    $region25: #{d_mlp_norm_forward_fm.1} parent=1 // pred_fallthru
      _
    // Predicated region
    $region26: #{d_mlp_norm_forward_fm.1} parent=1 // pred_check
      _
    $region27: #{d_mlp_norm_forward_fm.1} parent=1 // pred_check_branch
      %27 = sbr.rel (0) target = $region29
    $region28: #{d_mlp_norm_forward_fm.1} parent=1 // pred_region
      _
    $region29: #{d_mlp_norm_forward_fm.1} parent=1 // pred_fallthru
      _
    // Predicated region
    $region30: #{d_mlp_norm_forward_fm.1} parent=1 // pred_check
      _
    $region31: #{d_mlp_norm_forward_fm.1} parent=1 // pred_check_branch
      %29 = sbr.rel (0) target = $region33
    $region32: #{d_mlp_norm_forward_fm.1} parent=1 // pred_region
      _
    $region33: #{d_mlp_norm_forward_fm.1} parent=1 // pred_fallthru
      _
    %v30 = vld [vmem:[%s0] sm:$0xf]
    %v31 = vld [vmem:[%s1] sm:$0xff]
    %v32 = vld [vmem:[%s1 + $0x8] sm:$0xff]
    %v33 = vld [vmem:[%s1 + $0x10] sm:$0xff]
    %v34 = vld [vmem:[%s1 + $0x18] sm:$0xff]
    %v35 = vld [vmem:[%s2] sm:$0xff]
    %v36 = vld [vmem:[%s2 + $0x8] sm:$0xff]
    %v37 = vld [vmem:[%s2 + $0x10] sm:$0xff]
    %v38 = vld [vmem:[%s2 + $0x18] sm:$0xff]
    %40 = vset.pattern.permute.xlu0 0
    %41 = vperm.xlu0 %40, %v31
    %v42 = vpop.permute.xlu0 %41
    %45 = vset.pattern.permute.xlu0 0
    %46 = vperm.xlu0 %45, %v32
    %v47 = vpop.permute.xlu0 %46
    %50 = vset.pattern.permute.xlu0 0
    %51 = vperm.xlu0 %50, %v33
    %v52 = vpop.permute.xlu0 %51
    %55 = vset.pattern.permute.xlu0 0
    %56 = vperm.xlu0 %55, %v34
    %v57 = vpop.permute.xlu0 %56
    %v60 = vlaneseq
    %v61 = vshrl.u32 %v60, 7
    %v62 = vsub.s32 0, %v61
    %v63 = vrot.slane %v30, %v62
    %v64 = vlaneseq
    %v65 = vshrl.u32 %v64, 7
    %v66 = vsub.s32 2, %v65
    %v67 = vrot.slane %v30, %v66
    %v70 = vlaneseq
    %v71 = vshrl.u32 %v70, 7
    %v72 = vsub.s32 0, %v71
    %v73 = vrot.slane %v63, %v72
    %v74 = vlaneseq
    %v75 = vshrl.u32 %v74, 7
    %v76 = vsub.s32 0, %v75
    %v77 = vrot.slane %v67, %v76
    %v78 = vmul.f32 %v42, %v73
    %v79 = vmul.f32 %v42, %v77
    %v80 = vmul.f32 %v47, %v73
    %v81 = vmul.f32 %v47, %v77
    %v82 = vmul.f32 %v52, %v73
    %v83 = vmul.f32 %v52, %v77
    %v84 = vmul.f32 %v57, %v73
    %v85 = vmul.f32 %v57, %v77
    %87 = vset.pattern.permute.xlu0 0
    %88 = vperm.xlu0 %87, %v35
    %v89 = vpop.permute.xlu0 %88
    %92 = vset.pattern.permute.xlu0 0
    %93 = vperm.xlu0 %92, %v36
    %v94 = vpop.permute.xlu0 %93
    %97 = vset.pattern.permute.xlu0 0
    %98 = vperm.xlu0 %97, %v37
    %v99 = vpop.permute.xlu0 %98
    %102 = vset.pattern.permute.xlu0 0
    %103 = vperm.xlu0 %102, %v38
    %v104 = vpop.permute.xlu0 %103
    %v106 = vadd.f32 %v89, %v78
    %v107 = vadd.f32 %v89, %v79
    %v108 = vadd.f32 %v94, %v80
    %v109 = vadd.f32 %v94, %v81
    %v110 = vadd.f32 %v99, %v82
    %v111 = vadd.f32 %v99, %v83
    %v112 = vadd.f32 %v104, %v84
    %v113 = vadd.f32 %v104, %v85
    %114 = vset.pattern.permute.xlu0 1
    %115 = vperm.xlu0 %114, %v31
    %v116 = vpop.permute.xlu0 %115
    %118 = vset.pattern.permute.xlu0 1
    %119 = vperm.xlu0 %118, %v32
    %v120 = vpop.permute.xlu0 %119
    %122 = vset.pattern.permute.xlu0 1
    %123 = vperm.xlu0 %122, %v33
    %v124 = vpop.permute.xlu0 %123
    %126 = vset.pattern.permute.xlu0 1
    %127 = vperm.xlu0 %126, %v34
    %v128 = vpop.permute.xlu0 %127
    %v130 = vlaneseq
    %v131 = vshrl.u32 %v130, 7
    %v132 = vsub.s32 1, %v131
    %v133 = vrot.slane %v30, %v132
    %v134 = vlaneseq
    %v135 = vshrl.u32 %v134, 7
    %v136 = vsub.s32 3, %v135
    %v137 = vrot.slane %v30, %v136
    %v140 = vlaneseq
    %v141 = vshrl.u32 %v140, 7
    %v142 = vsub.s32 1, %v141
    %v143 = vrot.slane %v133, %v142
    %v144 = vlaneseq
    %v145 = vshrl.u32 %v144, 7
    %v146 = vsub.s32 1, %v145
    %v147 = vrot.slane %v137, %v146
    %v148 = vmul.f32 %v116, %v143
    %v149 = vmul.f32 %v116, %v147
    %v150 = vmul.f32 %v120, %v143
    %v151 = vmul.f32 %v120, %v147
    %v152 = vmul.f32 %v124, %v143
    %v153 = vmul.f32 %v124, %v147
    %v154 = vmul.f32 %v128, %v143
    %v155 = vmul.f32 %v128, %v147
    %v156 = vadd.f32 %v106, %v148
    %v157 = vadd.f32 %v107, %v149
    %v158 = vadd.f32 %v108, %v150
    %v159 = vadd.f32 %v109, %v151
    %v160 = vadd.f32 %v110, %v152
    %v161 = vadd.f32 %v111, %v153
    %v162 = vadd.f32 %v112, %v154
    %v163 = vadd.f32 %v113, %v155
    %v164 = vmax.f32 %v156, 0.0
    %v165 = vmax.f32 %v157, 0.0
    %v166 = vmax.f32 %v158, 0.0
    %v167 = vmax.f32 %v159, 0.0
    %v168 = vmax.f32 %v160, 0.0
    %v169 = vmax.f32 %v161, 0.0
    %v170 = vmax.f32 %v162, 0.0
    %v171 = vmax.f32 %v163, 0.0
    %v172 = vld [vmem:[%s3] sm:$0xff]
    %v173 = vld [vmem:[%s3 + $0x8] sm:$0xff]
    %v174 = vld [vmem:[%s3 + $0x10] sm:$0xff]
    %v175 = vld [vmem:[%s3 + $0x18] sm:$0xff]
    %v176 = vld [vmem:[%s4] sm:$0xff]
    %v177 = vld [vmem:[%s4 + $0x8] sm:$0xff]
    %v178 = vld [vmem:[%s4 + $0x10] sm:$0xff]
    %v179 = vld [vmem:[%s4 + $0x18] sm:$0xff]
    %181 = vset.pattern.permute.xlu0 0
    %182 = vperm.xlu0 %181, %v176
    %v183 = vpop.permute.xlu0 %182
    %186 = vset.pattern.permute.xlu0 0
    %187 = vperm.xlu0 %186, %v177
    %v188 = vpop.permute.xlu0 %187
    %191 = vset.pattern.permute.xlu0 0
    %192 = vperm.xlu0 %191, %v178
    %v193 = vpop.permute.xlu0 %192
    %196 = vset.pattern.permute.xlu0 0
    %197 = vperm.xlu0 %196, %v179
    %v198 = vpop.permute.xlu0 %197
    %vm200 = vcmask 261120
    %v202 = vsel %vm200, %v172, 0
    %v205 = vsel %vm200, %v173, 0
    %v208 = vsel %vm200, %v174, 0
    %v211 = vsel %vm200, %v175, 0
    %213 = vmatprep.subr.mxu0 0.0
    %214 = vmatpush1.msra.mxu0 0.0
    %215 = vmatprep.subr.mxu0 0.0
    %216 = vmatpush1.msra.mxu0 0.0
    %217 = vmatprep.subr.mxu0 0.0
    %218 = vmatpush1.msra.mxu0 0.0
    %219 = vmatprep.subr.mxu0 0.0
    %220 = vmatpush1.msra.mxu0 0.0
    %221 = vmatprep.subr.mxu0 0.0
    %222 = vmatpush1.msra.mxu0 0.0
    %223 = vmatprep.subr.mxu0 0.0
    %224 = vmatpush1.msra.mxu0 0.0
    %225 = vmatprep.subr.mxu0 0.0
    %226 = vmatpush1.msra.mxu0 0.0
    %227 = vmatprep.subr.mxu0 0.0
    %228 = vmatpush1.msra.mxu0 0.0
    %229 = vmatprep.subr.mxu0 0.0
    %230 = vmatpush1.msra.mxu0 0.0
    %231 = vmatprep.subr.mxu0 0.0
    %232 = vmatpush1.msra.mxu0 0.0
    %233 = vmatprep.subr.mxu0 0.0
    %234 = vmatpush1.msra.mxu0 0.0
    %235 = vmatprep.subr.mxu0 0.0
    %236 = vmatpush1.msra.mxu0 0.0
    %v237 = vand.u32 %v171, 4294901760
    %238 = vmatprep.subr.mxu0 %v237
    %v239 = vand.u32 %v170, 4294901760
    %240 = vmatpush1.msra.mxu0 %v239
    %v241 = vand.u32 %v169, 4294901760
    %242 = vmatprep.subr.mxu0 %v241
    %v243 = vand.u32 %v168, 4294901760
    %244 = vmatpush1.msra.mxu0 %v243
    %v245 = vand.u32 %v167, 4294901760
    %246 = vmatprep.subr.mxu0 %v245
    %v247 = vand.u32 %v166, 4294901760
    %248 = vmatpush1.msra.mxu0 %v247
    %v249 = vand.u32 %v165, 4294901760
    %250 = vmatprep.subr.mxu0 %v249
    %v251 = vand.u32 %v164, 4294901760
    %252 = vmatpush1.msra.mxu0 %v251
    %253 = vmatprep.subr.mxu0 0.0
    %254 = vmatpush2.msra.mxu0 0.0
    %255 = vmatprep.subr.mxu0 0.0
    %256 = vmatpush2.msra.mxu0 0.0
    %257 = vmatprep.subr.mxu0 0.0
    %258 = vmatpush2.msra.mxu0 0.0
    %259 = vmatprep.subr.mxu0 0.0
    %260 = vmatpush2.msra.mxu0 0.0
    %261 = vmatprep.subr.mxu0 0.0
    %262 = vmatpush2.msra.mxu0 0.0
    %263 = vmatprep.subr.mxu0 0.0
    %264 = vmatpush2.msra.mxu0 0.0
    %265 = vmatprep.subr.mxu0 0.0
    %266 = vmatpush2.msra.mxu0 0.0
    %267 = vmatprep.subr.mxu0 0.0
    %268 = vmatpush2.msra.mxu0 0.0
    %269 = vmatprep.subr.mxu0 0.0
    %270 = vmatpush2.msra.mxu0 0.0
    %271 = vmatprep.subr.mxu0 0.0
    %272 = vmatpush2.msra.mxu0 0.0
    %273 = vmatprep.subr.mxu0 0.0
    %274 = vmatpush2.msra.mxu0 0.0
    %275 = vmatprep.subr.mxu0 0.0
    %276 = vmatpush2.msra.mxu0 0.0
    %277 = vmatprep.subr.mxu0 0.0
    %278 = vmatpush2.msra.mxu0 0.0
    %279 = vmatprep.subr.mxu0 0.0
    %280 = vmatpush2.msra.mxu0 0.0
    %281 = vmatprep.subr.mxu0 0.0
    %282 = vmatpush2.msra.mxu0 0.0
    %283 = vmatprep.subr.mxu0 0.0
    %284 = vmatpush2.msra.mxu0 0.0
    %285 = vmatprep.mubr.f32.mxu0 0.0
    %v286 = vand.u32 %v202, 4294901760
    %v287 = vsub.f32 %v202, %v286
    %v288 = vand.u32 %v287, 4294901760
    %v289 = vsub.f32 %v287, %v288
    %v290 = vand.u32 %v289, 4294901760
    %291 = vmatmul.mubr.f32.gmra.mxu0 %v290
    %v292 = vpop.f32.mrf.mxu0
    %v293 = vadd.f32 %v183, %v292
    %v294 = vpop.f32.mrf.mxu0
    %v295 = vadd.f32 %v183, %v294
    %296 = vmatprep.mubr.f32.mxu0 0.0
    %v297 = vand.u32 %v205, 4294901760
    %v298 = vsub.f32 %v205, %v297
    %v299 = vand.u32 %v298, 4294901760
    %v300 = vsub.f32 %v298, %v299
    %v301 = vand.u32 %v300, 4294901760
    %302 = vmatmul.mubr.f32.gmra.mxu0 %v301
    %v303 = vpop.f32.mrf.mxu0
    %v304 = vadd.f32 %v188, %v303
    %v305 = vpop.f32.mrf.mxu0
    %v306 = vadd.f32 %v188, %v305
    %307 = vmatprep.mubr.f32.mxu0 0.0
    %v308 = vand.u32 %v208, 4294901760
    %v309 = vsub.f32 %v208, %v308
    %v310 = vand.u32 %v309, 4294901760
    %v311 = vsub.f32 %v309, %v310
    %v312 = vand.u32 %v311, 4294901760
    %313 = vmatmul.mubr.f32.gmra.mxu0 %v312
    %v314 = vpop.f32.mrf.mxu0
    %v315 = vadd.f32 %v193, %v314
    %v316 = vpop.f32.mrf.mxu0
    %v317 = vadd.f32 %v193, %v316
    %318 = vmatprep.mubr.f32.mxu0 0.0
    %v319 = vand.u32 %v211, 4294901760
    %v320 = vsub.f32 %v211, %v319
    %v321 = vand.u32 %v320, 4294901760
    %v322 = vsub.f32 %v320, %v321
    %v323 = vand.u32 %v322, 4294901760
    %324 = vmatmul.mubr.f32.gmra.mxu0 %v323
    %v325 = vpop.f32.mrf.mxu0
    %v326 = vadd.f32 %v198, %v325
    %v327 = vpop.f32.mrf.mxu0
    %v328 = vadd.f32 %v198, %v327
    %329 = vdwg.mxu0
    %330 = vmatprep.subr.mxu0 0.0
    %331 = vmatpush1.msra.mxu0 0.0
    %332 = vmatprep.subr.mxu0 0.0
    %333 = vmatpush1.msra.mxu0 0.0
    %334 = vmatprep.subr.mxu0 0.0
    %335 = vmatpush1.msra.mxu0 0.0
    %336 = vmatprep.subr.mxu0 0.0
    %337 = vmatpush1.msra.mxu0 0.0
    %338 = vmatprep.subr.mxu0 0.0
    %339 = vmatpush1.msra.mxu0 0.0
    %340 = vmatprep.subr.mxu0 0.0
    %341 = vmatpush1.msra.mxu0 0.0
    %342 = vmatprep.subr.mxu0 0.0
    %343 = vmatpush1.msra.mxu0 0.0
    %344 = vmatprep.subr.mxu0 0.0
    %345 = vmatpush1.msra.mxu0 0.0
    %346 = vmatprep.subr.mxu0 0.0
    %347 = vmatpush1.msra.mxu0 0.0
    %348 = vmatprep.subr.mxu0 0.0
    %349 = vmatpush1.msra.mxu0 0.0
    %350 = vmatprep.subr.mxu0 0.0
    %351 = vmatpush1.msra.mxu0 0.0
    %352 = vmatprep.subr.mxu0 0.0
    %353 = vmatpush1.msra.mxu0 0.0
    %v354 = vand.u32 %v171, 4294901760
    %v355 = vsub.f32 %v171, %v354
    %v356 = vand.u32 %v355, 4294901760
    %v357 = vsub.f32 %v355, %v356
    %v358 = vand.u32 %v357, 4294901760
    %359 = vmatprep.subr.mxu0 %v358
    %v360 = vand.u32 %v170, 4294901760
    %v361 = vsub.f32 %v170, %v360
    %v362 = vand.u32 %v361, 4294901760
    %v363 = vsub.f32 %v361, %v362
    %v364 = vand.u32 %v363, 4294901760
    %365 = vmatpush1.msra.mxu0 %v364
    %v366 = vand.u32 %v169, 4294901760
    %v367 = vsub.f32 %v169, %v366
    %v368 = vand.u32 %v367, 4294901760
    %v369 = vsub.f32 %v367, %v368
    %v370 = vand.u32 %v369, 4294901760
    %371 = vmatprep.subr.mxu0 %v370
    %v372 = vand.u32 %v168, 4294901760
    %v373 = vsub.f32 %v168, %v372
    %v374 = vand.u32 %v373, 4294901760
    %v375 = vsub.f32 %v373, %v374
    %v376 = vand.u32 %v375, 4294901760
    %377 = vmatpush1.msra.mxu0 %v376
    %v378 = vand.u32 %v167, 4294901760
    %v379 = vsub.f32 %v167, %v378
    %v380 = vand.u32 %v379, 4294901760
    %v381 = vsub.f32 %v379, %v380
    %v382 = vand.u32 %v381, 4294901760
    %383 = vmatprep.subr.mxu0 %v382
    %v384 = vand.u32 %v166, 4294901760
    %v385 = vsub.f32 %v166, %v384
    %v386 = vand.u32 %v385, 4294901760
    %v387 = vsub.f32 %v385, %v386
    %v388 = vand.u32 %v387, 4294901760
    %389 = vmatpush1.msra.mxu0 %v388
    %v390 = vand.u32 %v165, 4294901760
    %v391 = vsub.f32 %v165, %v390
    %v392 = vand.u32 %v391, 4294901760
    %v393 = vsub.f32 %v391, %v392
    %v394 = vand.u32 %v393, 4294901760
    %395 = vmatprep.subr.mxu0 %v394
    %v396 = vand.u32 %v164, 4294901760
    %v397 = vsub.f32 %v164, %v396
    %v398 = vand.u32 %v397, 4294901760
    %v399 = vsub.f32 %v397, %v398
    %v400 = vand.u32 %v399, 4294901760
    %401 = vmatpush1.msra.mxu0 %v400
    %402 = vmatprep.subr.mxu0 0.0
    %403 = vmatpush2.msra.mxu0 0.0
    %404 = vmatprep.subr.mxu0 0.0
    %405 = vmatpush2.msra.mxu0 0.0
    %406 = vmatprep.subr.mxu0 0.0
    %407 = vmatpush2.msra.mxu0 0.0
    %408 = vmatprep.subr.mxu0 0.0
    %409 = vmatpush2.msra.mxu0 0.0
    %410 = vmatprep.subr.mxu0 0.0
    %411 = vmatpush2.msra.mxu0 0.0
    %412 = vmatprep.subr.mxu0 0.0
    %413 = vmatpush2.msra.mxu0 0.0
    %414 = vmatprep.subr.mxu0 0.0
    %415 = vmatpush2.msra.mxu0 0.0
    %416 = vmatprep.subr.mxu0 0.0
    %417 = vmatpush2.msra.mxu0 0.0
    %418 = vmatprep.subr.mxu0 0.0
    %419 = vmatpush2.msra.mxu0 0.0
    %420 = vmatprep.subr.mxu0 0.0
    %421 = vmatpush2.msra.mxu0 0.0
    %422 = vmatprep.subr.mxu0 0.0
    %423 = vmatpush2.msra.mxu0 0.0
    %424 = vmatprep.subr.mxu0 0.0
    %425 = vmatpush2.msra.mxu0 0.0
    %426 = vmatprep.subr.mxu0 0.0
    %427 = vmatpush2.msra.mxu0 0.0
    %428 = vmatprep.subr.mxu0 0.0
    %429 = vmatpush2.msra.mxu0 0.0
    %430 = vmatprep.subr.mxu0 0.0
    %431 = vmatpush2.msra.mxu0 0.0
    %432 = vmatprep.subr.mxu0 0.0
    %433 = vmatpush2.msra.mxu0 0.0
    %434 = vmatprep.mubr.f32.mxu0 0.0
    %v435 = vand.u32 %v202, 4294901760
    %436 = vmatmul.mubr.f32.gmra.mxu0 %v435
    %v437 = vpop.f32.mrf.mxu0
    %v438 = vadd.f32 %v293, %v437
    %v439 = vpop.f32.mrf.mxu0
    %v440 = vadd.f32 %v295, %v439
    %441 = vmatprep.mubr.f32.mxu0 0.0
    %v442 = vand.u32 %v205, 4294901760
    %443 = vmatmul.mubr.f32.gmra.mxu0 %v442
    %v444 = vpop.f32.mrf.mxu0
    %v445 = vadd.f32 %v304, %v444
    %v446 = vpop.f32.mrf.mxu0
    %v447 = vadd.f32 %v306, %v446
    %448 = vmatprep.mubr.f32.mxu0 0.0
    %v449 = vand.u32 %v208, 4294901760
    %450 = vmatmul.mubr.f32.gmra.mxu0 %v449
    %v451 = vpop.f32.mrf.mxu0
    %v452 = vadd.f32 %v315, %v451
    %v453 = vpop.f32.mrf.mxu0
    %v454 = vadd.f32 %v317, %v453
    %455 = vmatprep.mubr.f32.mxu0 0.0
    %v456 = vand.u32 %v211, 4294901760
    %457 = vmatmul.mubr.f32.gmra.mxu0 %v456
    %v458 = vpop.f32.mrf.mxu0
    %v459 = vadd.f32 %v326, %v458
    %v460 = vpop.f32.mrf.mxu0
    %v461 = vadd.f32 %v328, %v460
    %462 = vdwg.mxu0
    %463 = vmatprep.subr.mxu0 0.0
    %464 = vmatpush1.msra.mxu0 0.0
    %465 = vmatprep.subr.mxu0 0.0
    %466 = vmatpush1.msra.mxu0 0.0
    %467 = vmatprep.subr.mxu0 0.0
    %468 = vmatpush1.msra.mxu0 0.0
    %469 = vmatprep.subr.mxu0 0.0
    %470 = vmatpush1.msra.mxu0 0.0
    %471 = vmatprep.subr.mxu0 0.0
    %472 = vmatpush1.msra.mxu0 0.0
    %473 = vmatprep.subr.mxu0 0.0
    %474 = vmatpush1.msra.mxu0 0.0
    %475 = vmatprep.subr.mxu0 0.0
    %476 = vmatpush1.msra.mxu0 0.0
    %477 = vmatprep.subr.mxu0 0.0
    %478 = vmatpush1.msra.mxu0 0.0
    %479 = vmatprep.subr.mxu0 0.0
    %480 = vmatpush1.msra.mxu0 0.0
    %481 = vmatprep.subr.mxu0 0.0
    %482 = vmatpush1.msra.mxu0 0.0
    %483 = vmatprep.subr.mxu0 0.0
    %484 = vmatpush1.msra.mxu0 0.0
    %485 = vmatprep.subr.mxu0 0.0
    %486 = vmatpush1.msra.mxu0 0.0
    %v487 = vand.u32 %v171, 4294901760
    %v488 = vsub.f32 %v171, %v487
    %489 = vmatprep.subr.mxu0 %v488
    %v490 = vand.u32 %v170, 4294901760
    %v491 = vsub.f32 %v170, %v490
    %492 = vmatpush1.msra.mxu0 %v491
    %v493 = vand.u32 %v169, 4294901760
    %v494 = vsub.f32 %v169, %v493
    %495 = vmatprep.subr.mxu0 %v494
    %v496 = vand.u32 %v168, 4294901760
    %v497 = vsub.f32 %v168, %v496
    %498 = vmatpush1.msra.mxu0 %v497
    %v499 = vand.u32 %v167, 4294901760
    %v500 = vsub.f32 %v167, %v499
    %501 = vmatprep.subr.mxu0 %v500
    %v502 = vand.u32 %v166, 4294901760
    %v503 = vsub.f32 %v166, %v502
    %504 = vmatpush1.msra.mxu0 %v503
    %v505 = vand.u32 %v165, 4294901760
    %v506 = vsub.f32 %v165, %v505
    %507 = vmatprep.subr.mxu0 %v506
    %v508 = vand.u32 %v164, 4294901760
    %v509 = vsub.f32 %v164, %v508
    %510 = vmatpush1.msra.mxu0 %v509
    %511 = vmatprep.subr.mxu0 0.0
    %512 = vmatpush2.msra.mxu0 0.0
    %513 = vmatprep.subr.mxu0 0.0
    %514 = vmatpush2.msra.mxu0 0.0
    %515 = vmatprep.subr.mxu0 0.0
    %516 = vmatpush2.msra.mxu0 0.0
    %517 = vmatprep.subr.mxu0 0.0
    %518 = vmatpush2.msra.mxu0 0.0
    %519 = vmatprep.subr.mxu0 0.0
    %520 = vmatpush2.msra.mxu0 0.0
    %521 = vmatprep.subr.mxu0 0.0
    %522 = vmatpush2.msra.mxu0 0.0
    %523 = vmatprep.subr.mxu0 0.0
    %524 = vmatpush2.msra.mxu0 0.0
    %525 = vmatprep.subr.mxu0 0.0
    %526 = vmatpush2.msra.mxu0 0.0
    %527 = vmatprep.subr.mxu0 0.0
    %528 = vmatpush2.msra.mxu0 0.0
    %529 = vmatprep.subr.mxu0 0.0
    %530 = vmatpush2.msra.mxu0 0.0
    %531 = vmatprep.subr.mxu0 0.0
    %532 = vmatpush2.msra.mxu0 0.0
    %533 = vmatprep.subr.mxu0 0.0
    %534 = vmatpush2.msra.mxu0 0.0
    %535 = vmatprep.subr.mxu0 0.0
    %536 = vmatpush2.msra.mxu0 0.0
    %537 = vmatprep.subr.mxu0 0.0
    %538 = vmatpush2.msra.mxu0 0.0
    %539 = vmatprep.subr.mxu0 0.0
    %540 = vmatpush2.msra.mxu0 0.0
    %541 = vmatprep.subr.mxu0 0.0
    %542 = vmatpush2.msra.mxu0 0.0
    %543 = vmatprep.mubr.f32.mxu0 0.0
    %v544 = vand.u32 %v202, 4294901760
    %v545 = vsub.f32 %v202, %v544
    %546 = vmatmul.mubr.f32.gmra.mxu0 %v545
    %v547 = vpop.f32.mrf.mxu0
    %v548 = vadd.f32 %v438, %v547
    %v549 = vpop.f32.mrf.mxu0
    %v550 = vadd.f32 %v440, %v549
    %551 = vmatprep.mubr.f32.mxu0 0.0
    %v552 = vand.u32 %v205, 4294901760
    %v553 = vsub.f32 %v205, %v552
    %554 = vmatmul.mubr.f32.gmra.mxu0 %v553
    %v555 = vpop.f32.mrf.mxu0
    %v556 = vadd.f32 %v445, %v555
    %v557 = vpop.f32.mrf.mxu0
    %v558 = vadd.f32 %v447, %v557
    %559 = vmatprep.mubr.f32.mxu0 0.0
    %v560 = vand.u32 %v208, 4294901760
    %v561 = vsub.f32 %v208, %v560
    %562 = vmatmul.mubr.f32.gmra.mxu0 %v561
    %v563 = vpop.f32.mrf.mxu0
    %v564 = vadd.f32 %v452, %v563
    %v565 = vpop.f32.mrf.mxu0
    %v566 = vadd.f32 %v454, %v565
    %567 = vmatprep.mubr.f32.mxu0 0.0
    %v568 = vand.u32 %v211, 4294901760
    %v569 = vsub.f32 %v211, %v568
    %570 = vmatmul.mubr.f32.gmra.mxu0 %v569
    %v571 = vpop.f32.mrf.mxu0
    %v572 = vadd.f32 %v459, %v571
    %v573 = vpop.f32.mrf.mxu0
    %v574 = vadd.f32 %v461, %v573
    %575 = vdwg.mxu0
    %576 = vmatprep.subr.mxu0 0.0
    %577 = vmatpush1.msra.mxu0 0.0
    %578 = vmatprep.subr.mxu0 0.0
    %579 = vmatpush1.msra.mxu0 0.0
    %580 = vmatprep.subr.mxu0 0.0
    %581 = vmatpush1.msra.mxu0 0.0
    %582 = vmatprep.subr.mxu0 0.0
    %583 = vmatpush1.msra.mxu0 0.0
    %584 = vmatprep.subr.mxu0 0.0
    %585 = vmatpush1.msra.mxu0 0.0
    %586 = vmatprep.subr.mxu0 0.0
    %587 = vmatpush1.msra.mxu0 0.0
    %588 = vmatprep.subr.mxu0 0.0
    %589 = vmatpush1.msra.mxu0 0.0
    %590 = vmatprep.subr.mxu0 0.0
    %591 = vmatpush1.msra.mxu0 0.0
    %592 = vmatprep.subr.mxu0 0.0
    %593 = vmatpush1.msra.mxu0 0.0
    %594 = vmatprep.subr.mxu0 0.0
    %595 = vmatpush1.msra.mxu0 0.0
    %596 = vmatprep.subr.mxu0 0.0
    %597 = vmatpush1.msra.mxu0 0.0
    %598 = vmatprep.subr.mxu0 0.0
    %599 = vmatpush1.msra.mxu0 0.0
    %v600 = vand.u32 %v171, 4294901760
    %601 = vmatprep.subr.mxu0 %v600
    %v602 = vand.u32 %v170, 4294901760
    %603 = vmatpush1.msra.mxu0 %v602
    %v604 = vand.u32 %v169, 4294901760
    %605 = vmatprep.subr.mxu0 %v604
    %v606 = vand.u32 %v168, 4294901760
    %607 = vmatpush1.msra.mxu0 %v606
    %v608 = vand.u32 %v167, 4294901760
    %609 = vmatprep.subr.mxu0 %v608
    %v610 = vand.u32 %v166, 4294901760
    %611 = vmatpush1.msra.mxu0 %v610
    %v612 = vand.u32 %v165, 4294901760
    %613 = vmatprep.subr.mxu0 %v612
    %v614 = vand.u32 %v164, 4294901760
    %615 = vmatpush1.msra.mxu0 %v614
    %616 = vmatprep.subr.mxu0 0.0
    %617 = vmatpush2.msra.mxu0 0.0
    %618 = vmatprep.subr.mxu0 0.0
    %619 = vmatpush2.msra.mxu0 0.0
    %620 = vmatprep.subr.mxu0 0.0
    %621 = vmatpush2.msra.mxu0 0.0
    %622 = vmatprep.subr.mxu0 0.0
    %623 = vmatpush2.msra.mxu0 0.0
    %624 = vmatprep.subr.mxu0 0.0
    %625 = vmatpush2.msra.mxu0 0.0
    %626 = vmatprep.subr.mxu0 0.0
    %627 = vmatpush2.msra.mxu0 0.0
    %628 = vmatprep.subr.mxu0 0.0
    %629 = vmatpush2.msra.mxu0 0.0
    %630 = vmatprep.subr.mxu0 0.0
    %631 = vmatpush2.msra.mxu0 0.0
    %632 = vmatprep.subr.mxu0 0.0
    %633 = vmatpush2.msra.mxu0 0.0
    %634 = vmatprep.subr.mxu0 0.0
    %635 = vmatpush2.msra.mxu0 0.0
    %636 = vmatprep.subr.mxu0 0.0
    %637 = vmatpush2.msra.mxu0 0.0
    %638 = vmatprep.subr.mxu0 0.0
    %639 = vmatpush2.msra.mxu0 0.0
    %640 = vmatprep.subr.mxu0 0.0
    %641 = vmatpush2.msra.mxu0 0.0
    %642 = vmatprep.subr.mxu0 0.0
    %643 = vmatpush2.msra.mxu0 0.0
    %644 = vmatprep.subr.mxu0 0.0
    %645 = vmatpush2.msra.mxu0 0.0
    %646 = vmatprep.subr.mxu0 0.0
    %647 = vmatpush2.msra.mxu0 0.0
    %648 = vmatprep.mubr.f32.mxu0 0.0
    %v649 = vand.u32 %v202, 4294901760
    %v650 = vsub.f32 %v202, %v649
    %v651 = vand.u32 %v650, 4294901760
    %652 = vmatmul.mubr.f32.gmra.mxu0 %v651
    %v653 = vpop.f32.mrf.mxu0
    %v654 = vadd.f32 %v548, %v653
    %v655 = vpop.f32.mrf.mxu0
    %v656 = vadd.f32 %v550, %v655
    %657 = vmatprep.mubr.f32.mxu0 0.0
    %v658 = vand.u32 %v205, 4294901760
    %v659 = vsub.f32 %v205, %v658
    %v660 = vand.u32 %v659, 4294901760
    %661 = vmatmul.mubr.f32.gmra.mxu0 %v660
    %v662 = vpop.f32.mrf.mxu0
    %v663 = vadd.f32 %v556, %v662
    %v664 = vpop.f32.mrf.mxu0
    %v665 = vadd.f32 %v558, %v664
    %666 = vmatprep.mubr.f32.mxu0 0.0
    %v667 = vand.u32 %v208, 4294901760
    %v668 = vsub.f32 %v208, %v667
    %v669 = vand.u32 %v668, 4294901760
    %670 = vmatmul.mubr.f32.gmra.mxu0 %v669
    %v671 = vpop.f32.mrf.mxu0
    %v672 = vadd.f32 %v564, %v671
    %v673 = vpop.f32.mrf.mxu0
    %v674 = vadd.f32 %v566, %v673
    %675 = vmatprep.mubr.f32.mxu0 0.0
    %v676 = vand.u32 %v211, 4294901760
    %v677 = vsub.f32 %v211, %v676
    %v678 = vand.u32 %v677, 4294901760
    %679 = vmatmul.mubr.f32.gmra.mxu0 %v678
    %v680 = vpop.f32.mrf.mxu0
    %v681 = vadd.f32 %v572, %v680
    %v682 = vpop.f32.mrf.mxu0
    %v683 = vadd.f32 %v574, %v682
    %684 = vdwg.mxu0
    %685 = vmatprep.subr.mxu0 0.0
    %686 = vmatpush1.msra.mxu0 0.0
    %687 = vmatprep.subr.mxu0 0.0
    %688 = vmatpush1.msra.mxu0 0.0
    %689 = vmatprep.subr.mxu0 0.0
    %690 = vmatpush1.msra.mxu0 0.0
    %691 = vmatprep.subr.mxu0 0.0
    %692 = vmatpush1.msra.mxu0 0.0
    %693 = vmatprep.subr.mxu0 0.0
    %694 = vmatpush1.msra.mxu0 0.0
    %695 = vmatprep.subr.mxu0 0.0
    %696 = vmatpush1.msra.mxu0 0.0
    %697 = vmatprep.subr.mxu0 0.0
    %698 = vmatpush1.msra.mxu0 0.0
    %699 = vmatprep.subr.mxu0 0.0
    %700 = vmatpush1.msra.mxu0 0.0
    %701 = vmatprep.subr.mxu0 0.0
    %702 = vmatpush1.msra.mxu0 0.0
    %703 = vmatprep.subr.mxu0 0.0
    %704 = vmatpush1.msra.mxu0 0.0
    %705 = vmatprep.subr.mxu0 0.0
    %706 = vmatpush1.msra.mxu0 0.0
    %707 = vmatprep.subr.mxu0 0.0
    %708 = vmatpush1.msra.mxu0 0.0
    %v709 = vand.u32 %v171, 4294901760
    %v710 = vsub.f32 %v171, %v709
    %v711 = vand.u32 %v710, 4294901760
    %712 = vmatprep.subr.mxu0 %v711
    %v713 = vand.u32 %v170, 4294901760
    %v714 = vsub.f32 %v170, %v713
    %v715 = vand.u32 %v714, 4294901760
    %716 = vmatpush1.msra.mxu0 %v715
    %v717 = vand.u32 %v169, 4294901760
    %v718 = vsub.f32 %v169, %v717
    %v719 = vand.u32 %v718, 4294901760
    %720 = vmatprep.subr.mxu0 %v719
    %v721 = vand.u32 %v168, 4294901760
    %v722 = vsub.f32 %v168, %v721
    %v723 = vand.u32 %v722, 4294901760
    %724 = vmatpush1.msra.mxu0 %v723
    %v725 = vand.u32 %v167, 4294901760
    %v726 = vsub.f32 %v167, %v725
    %v727 = vand.u32 %v726, 4294901760
    %728 = vmatprep.subr.mxu0 %v727
    %v729 = vand.u32 %v166, 4294901760
    %v730 = vsub.f32 %v166, %v729
    %v731 = vand.u32 %v730, 4294901760
    %732 = vmatpush1.msra.mxu0 %v731
    %v733 = vand.u32 %v165, 4294901760
    %v734 = vsub.f32 %v165, %v733
    %v735 = vand.u32 %v734, 4294901760
    %736 = vmatprep.subr.mxu0 %v735
    %v737 = vand.u32 %v164, 4294901760
    %v738 = vsub.f32 %v164, %v737
    %v739 = vand.u32 %v738, 4294901760
    %740 = vmatpush1.msra.mxu0 %v739
    %741 = vmatprep.subr.mxu0 0.0
    %742 = vmatpush2.msra.mxu0 0.0
    %743 = vmatprep.subr.mxu0 0.0
    %744 = vmatpush2.msra.mxu0 0.0
    %745 = vmatprep.subr.mxu0 0.0
    %746 = vmatpush2.msra.mxu0 0.0
    %747 = vmatprep.subr.mxu0 0.0
    %748 = vmatpush2.msra.mxu0 0.0
    %749 = vmatprep.subr.mxu0 0.0
    %750 = vmatpush2.msra.mxu0 0.0
    %751 = vmatprep.subr.mxu0 0.0
    %752 = vmatpush2.msra.mxu0 0.0
    %753 = vmatprep.subr.mxu0 0.0
    %754 = vmatpush2.msra.mxu0 0.0
    %755 = vmatprep.subr.mxu0 0.0
    %756 = vmatpush2.msra.mxu0 0.0
    %757 = vmatprep.subr.mxu0 0.0
    %758 = vmatpush2.msra.mxu0 0.0
    %759 = vmatprep.subr.mxu0 0.0
    %760 = vmatpush2.msra.mxu0 0.0
    %761 = vmatprep.subr.mxu0 0.0
    %762 = vmatpush2.msra.mxu0 0.0
    %763 = vmatprep.subr.mxu0 0.0
    %764 = vmatpush2.msra.mxu0 0.0
    %765 = vmatprep.subr.mxu0 0.0
    %766 = vmatpush2.msra.mxu0 0.0
    %767 = vmatprep.subr.mxu0 0.0
    %768 = vmatpush2.msra.mxu0 0.0
    %769 = vmatprep.subr.mxu0 0.0
    %770 = vmatpush2.msra.mxu0 0.0
    %771 = vmatprep.subr.mxu0 0.0
    %772 = vmatpush2.msra.mxu0 0.0
    %773 = vmatprep.mubr.f32.mxu0 0.0
    %v774 = vand.u32 %v202, 4294901760
    %775 = vmatmul.mubr.f32.gmra.mxu0 %v774
    %v776 = vpop.f32.mrf.mxu0
    %v777 = vadd.f32 %v654, %v776
    %v778 = vpop.f32.mrf.mxu0
    %v779 = vadd.f32 %v656, %v778
    %780 = vmatprep.mubr.f32.mxu0 0.0
    %v781 = vand.u32 %v205, 4294901760
    %782 = vmatmul.mubr.f32.gmra.mxu0 %v781
    %v783 = vpop.f32.mrf.mxu0
    %v784 = vadd.f32 %v663, %v783
    %v785 = vpop.f32.mrf.mxu0
    %v786 = vadd.f32 %v665, %v785
    %787 = vmatprep.mubr.f32.mxu0 0.0
    %v788 = vand.u32 %v208, 4294901760
    %789 = vmatmul.mubr.f32.gmra.mxu0 %v788
    %v790 = vpop.f32.mrf.mxu0
    %v791 = vadd.f32 %v672, %v790
    %v792 = vpop.f32.mrf.mxu0
    %v793 = vadd.f32 %v674, %v792
    %794 = vmatprep.mubr.f32.mxu0 0.0
    %v795 = vand.u32 %v211, 4294901760
    %796 = vmatmul.mubr.f32.gmra.mxu0 %v795
    %v797 = vpop.f32.mrf.mxu0
    %v798 = vadd.f32 %v681, %v797
    %v799 = vpop.f32.mrf.mxu0
    %v800 = vadd.f32 %v683, %v799
    %801 = vdwg.mxu0
    %802 = vmatprep.subr.mxu0 0.0
    %803 = vmatpush1.msra.mxu0 0.0
    %804 = vmatprep.subr.mxu0 0.0
    %805 = vmatpush1.msra.mxu0 0.0
    %806 = vmatprep.subr.mxu0 0.0
    %807 = vmatpush1.msra.mxu0 0.0
    %808 = vmatprep.subr.mxu0 0.0
    %809 = vmatpush1.msra.mxu0 0.0
    %810 = vmatprep.subr.mxu0 0.0
    %811 = vmatpush1.msra.mxu0 0.0
    %812 = vmatprep.subr.mxu0 0.0
    %813 = vmatpush1.msra.mxu0 0.0
    %814 = vmatprep.subr.mxu0 0.0
    %815 = vmatpush1.msra.mxu0 0.0
    %816 = vmatprep.subr.mxu0 0.0
    %817 = vmatpush1.msra.mxu0 0.0
    %818 = vmatprep.subr.mxu0 0.0
    %819 = vmatpush1.msra.mxu0 0.0
    %820 = vmatprep.subr.mxu0 0.0
    %821 = vmatpush1.msra.mxu0 0.0
    %822 = vmatprep.subr.mxu0 0.0
    %823 = vmatpush1.msra.mxu0 0.0
    %824 = vmatprep.subr.mxu0 0.0
    %825 = vmatpush1.msra.mxu0 0.0
    %v826 = vand.u32 %v171, 4294901760
    %827 = vmatprep.subr.mxu0 %v826
    %v828 = vand.u32 %v170, 4294901760
    %829 = vmatpush1.msra.mxu0 %v828
    %v830 = vand.u32 %v169, 4294901760
    %831 = vmatprep.subr.mxu0 %v830
    %v832 = vand.u32 %v168, 4294901760
    %833 = vmatpush1.msra.mxu0 %v832
    %v834 = vand.u32 %v167, 4294901760
    %835 = vmatprep.subr.mxu0 %v834
    %v836 = vand.u32 %v166, 4294901760
    %837 = vmatpush1.msra.mxu0 %v836
    %v838 = vand.u32 %v165, 4294901760
    %839 = vmatprep.subr.mxu0 %v838
    %v840 = vand.u32 %v164, 4294901760
    %841 = vmatpush1.msra.mxu0 %v840
    %842 = vmatprep.subr.mxu0 0.0
    %843 = vmatpush2.msra.mxu0 0.0
    %844 = vmatprep.subr.mxu0 0.0
    %845 = vmatpush2.msra.mxu0 0.0
    %846 = vmatprep.subr.mxu0 0.0
    %847 = vmatpush2.msra.mxu0 0.0
    %848 = vmatprep.subr.mxu0 0.0
    %849 = vmatpush2.msra.mxu0 0.0
    %850 = vmatprep.subr.mxu0 0.0
    %851 = vmatpush2.msra.mxu0 0.0
    %852 = vmatprep.subr.mxu0 0.0
    %853 = vmatpush2.msra.mxu0 0.0
    %854 = vmatprep.subr.mxu0 0.0
    %855 = vmatpush2.msra.mxu0 0.0
    %856 = vmatprep.subr.mxu0 0.0
    %857 = vmatpush2.msra.mxu0 0.0
    %858 = vmatprep.subr.mxu0 0.0
    %859 = vmatpush2.msra.mxu0 0.0
    %860 = vmatprep.subr.mxu0 0.0
    %861 = vmatpush2.msra.mxu0 0.0
    %862 = vmatprep.subr.mxu0 0.0
    %863 = vmatpush2.msra.mxu0 0.0
    %864 = vmatprep.subr.mxu0 0.0
    %865 = vmatpush2.msra.mxu0 0.0
    %866 = vmatprep.subr.mxu0 0.0
    %867 = vmatpush2.msra.mxu0 0.0
    %868 = vmatprep.subr.mxu0 0.0
    %869 = vmatpush2.msra.mxu0 0.0
    %870 = vmatprep.subr.mxu0 0.0
    %871 = vmatpush2.msra.mxu0 0.0
    %872 = vmatprep.subr.mxu0 0.0
    %873 = vmatpush2.msra.mxu0 0.0
    %874 = vmatprep.mubr.f32.mxu0 0.0
    %v875 = vand.u32 %v202, 4294901760
    %876 = vmatmul.mubr.f32.gmra.mxu0 %v875
    %v877 = vpop.f32.mrf.mxu0
    %v878 = vadd.f32 %v777, %v877
    %v879 = vpop.f32.mrf.mxu0
    %v880 = vadd.f32 %v779, %v879
    %881 = vmatprep.mubr.f32.mxu0 0.0
    %v882 = vand.u32 %v205, 4294901760
    %883 = vmatmul.mubr.f32.gmra.mxu0 %v882
    %v884 = vpop.f32.mrf.mxu0
    %v885 = vadd.f32 %v784, %v884
    %v886 = vpop.f32.mrf.mxu0
    %v887 = vadd.f32 %v786, %v886
    %888 = vmatprep.mubr.f32.mxu0 0.0
    %v889 = vand.u32 %v208, 4294901760
    %890 = vmatmul.mubr.f32.gmra.mxu0 %v889
    %v891 = vpop.f32.mrf.mxu0
    %v892 = vadd.f32 %v791, %v891
    %v893 = vpop.f32.mrf.mxu0
    %v894 = vadd.f32 %v793, %v893
    %895 = vmatprep.mubr.f32.mxu0 0.0
    %v896 = vand.u32 %v211, 4294901760
    %897 = vmatmul.mubr.f32.gmra.mxu0 %v896
    %v898 = vpop.f32.mrf.mxu0
    %v899 = vadd.f32 %v798, %v898
    %v900 = vpop.f32.mrf.mxu0
    %v901 = vadd.f32 %v800, %v900
    %902 = vdwg.mxu0
    %v903 = vmax.f32 %v878, 0.0
    %v904 = vmax.f32 %v880, 0.0
    %v905 = vmax.f32 %v885, 0.0
    %v906 = vmax.f32 %v887, 0.0
    %v907 = vmax.f32 %v892, 0.0
    %v908 = vmax.f32 %v894, 0.0
    %v909 = vmax.f32 %v899, 0.0
    %v910 = vmax.f32 %v901, 0.0
    %v911 = vld [vmem:[%s5] sm:$0xff]
    %v912 = vld [vmem:[%s5 + $0x8] sm:$0xff]
    %v913 = vld [vmem:[%s6] sm:$0xff]
    %v914 = vld [vmem:[%s6 + $0x8] sm:$0xff]
    %916 = vset.pattern.permute.xlu0 0
    %917 = vperm.xlu0 %916, %v913
    %v918 = vpop.permute.xlu0 %917
    %921 = vset.pattern.permute.xlu0 0
    %922 = vperm.xlu0 %921, %v914
    %v923 = vpop.permute.xlu0 %922
    %v926 = vsel %vm200, %v911, 0
    %v929 = vsel %vm200, %v912, 0
    %931 = vmatprep.subr.mxu0 0.0
    %932 = vmatpush1.msra.mxu0 0.0
    %933 = vmatprep.subr.mxu0 0.0
    %934 = vmatpush1.msra.mxu0 0.0
    %935 = vmatprep.subr.mxu0 0.0
    %936 = vmatpush1.msra.mxu0 0.0
    %937 = vmatprep.subr.mxu0 0.0
    %938 = vmatpush1.msra.mxu0 0.0
    %939 = vmatprep.subr.mxu0 0.0
    %940 = vmatpush1.msra.mxu0 0.0
    %941 = vmatprep.subr.mxu0 0.0
    %942 = vmatpush1.msra.mxu0 0.0
    %943 = vmatprep.subr.mxu0 0.0
    %944 = vmatpush1.msra.mxu0 0.0
    %945 = vmatprep.subr.mxu0 0.0
    %946 = vmatpush1.msra.mxu0 0.0
    %947 = vmatprep.subr.mxu0 0.0
    %948 = vmatpush1.msra.mxu0 0.0
    %949 = vmatprep.subr.mxu0 0.0
    %950 = vmatpush1.msra.mxu0 0.0
    %951 = vmatprep.subr.mxu0 0.0
    %952 = vmatpush1.msra.mxu0 0.0
    %953 = vmatprep.subr.mxu0 0.0
    %954 = vmatpush1.msra.mxu0 0.0
    %v955 = vand.u32 %v910, 4294901760
    %956 = vmatprep.subr.mxu0 %v955
    %v957 = vand.u32 %v909, 4294901760
    %958 = vmatpush1.msra.mxu0 %v957
    %v959 = vand.u32 %v908, 4294901760
    %960 = vmatprep.subr.mxu0 %v959
    %v961 = vand.u32 %v907, 4294901760
    %962 = vmatpush1.msra.mxu0 %v961
    %v963 = vand.u32 %v906, 4294901760
    %964 = vmatprep.subr.mxu0 %v963
    %v965 = vand.u32 %v905, 4294901760
    %966 = vmatpush1.msra.mxu0 %v965
    %v967 = vand.u32 %v904, 4294901760
    %968 = vmatprep.subr.mxu0 %v967
    %v969 = vand.u32 %v903, 4294901760
    %970 = vmatpush1.msra.mxu0 %v969
    %971 = vmatprep.subr.mxu0 0.0
    %972 = vmatpush2.msra.mxu0 0.0
    %973 = vmatprep.subr.mxu0 0.0
    %974 = vmatpush2.msra.mxu0 0.0
    %975 = vmatprep.subr.mxu0 0.0
    %976 = vmatpush2.msra.mxu0 0.0
    %977 = vmatprep.subr.mxu0 0.0
    %978 = vmatpush2.msra.mxu0 0.0
    %979 = vmatprep.subr.mxu0 0.0
    %980 = vmatpush2.msra.mxu0 0.0
    %981 = vmatprep.subr.mxu0 0.0
    %982 = vmatpush2.msra.mxu0 0.0
    %983 = vmatprep.subr.mxu0 0.0
    %984 = vmatpush2.msra.mxu0 0.0
    %985 = vmatprep.subr.mxu0 0.0
    %986 = vmatpush2.msra.mxu0 0.0
    %987 = vmatprep.subr.mxu0 0.0
    %988 = vmatpush2.msra.mxu0 0.0
    %989 = vmatprep.subr.mxu0 0.0
    %990 = vmatpush2.msra.mxu0 0.0
    %991 = vmatprep.subr.mxu0 0.0
    %992 = vmatpush2.msra.mxu0 0.0
    %993 = vmatprep.subr.mxu0 0.0
    %994 = vmatpush2.msra.mxu0 0.0
    %995 = vmatprep.subr.mxu0 0.0
    %996 = vmatpush2.msra.mxu0 0.0
    %997 = vmatprep.subr.mxu0 0.0
    %998 = vmatpush2.msra.mxu0 0.0
    %999 = vmatprep.subr.mxu0 0.0
    %1000 = vmatpush2.msra.mxu0 0.0
    %1001 = vmatprep.subr.mxu0 0.0
    %1002 = vmatpush2.msra.mxu0 0.0
    %1003 = vmatprep.mubr.f32.mxu0 0.0
    %v1004 = vand.u32 %v926, 4294901760
    %v1005 = vsub.f32 %v926, %v1004
    %v1006 = vand.u32 %v1005, 4294901760
    %v1007 = vsub.f32 %v1005, %v1006
    %v1008 = vand.u32 %v1007, 4294901760
    %1009 = vmatmul.mubr.f32.gmra.mxu0 %v1008
    %v1010 = vpop.f32.mrf.mxu0
    %v1011 = vadd.f32 %v918, %v1010
    %v1012 = vpop.f32.mrf.mxu0
    %v1013 = vadd.f32 %v918, %v1012
    %1014 = vmatprep.mubr.f32.mxu0 0.0
    %v1015 = vand.u32 %v929, 4294901760
    %v1016 = vsub.f32 %v929, %v1015
    %v1017 = vand.u32 %v1016, 4294901760
    %v1018 = vsub.f32 %v1016, %v1017
    %v1019 = vand.u32 %v1018, 4294901760
    %1020 = vmatmul.mubr.f32.gmra.mxu0 %v1019
    %v1021 = vpop.f32.mrf.mxu0
    %v1022 = vadd.f32 %v923, %v1021
    %v1023 = vpop.f32.mrf.mxu0
    %v1024 = vadd.f32 %v923, %v1023
    %1025 = vdwg.mxu0
    %1026 = vmatprep.subr.mxu0 0.0
    %1027 = vmatpush1.msra.mxu0 0.0
    %1028 = vmatprep.subr.mxu0 0.0
    %1029 = vmatpush1.msra.mxu0 0.0
    %1030 = vmatprep.subr.mxu0 0.0
    %1031 = vmatpush1.msra.mxu0 0.0
    %1032 = vmatprep.subr.mxu0 0.0
    %1033 = vmatpush1.msra.mxu0 0.0
    %1034 = vmatprep.subr.mxu0 0.0
    %1035 = vmatpush1.msra.mxu0 0.0
    %1036 = vmatprep.subr.mxu0 0.0
    %1037 = vmatpush1.msra.mxu0 0.0
    %1038 = vmatprep.subr.mxu0 0.0
    %1039 = vmatpush1.msra.mxu0 0.0
    %1040 = vmatprep.subr.mxu0 0.0
    %1041 = vmatpush1.msra.mxu0 0.0
    %1042 = vmatprep.subr.mxu0 0.0
    %1043 = vmatpush1.msra.mxu0 0.0
    %1044 = vmatprep.subr.mxu0 0.0
    %1045 = vmatpush1.msra.mxu0 0.0
    %1046 = vmatprep.subr.mxu0 0.0
    %1047 = vmatpush1.msra.mxu0 0.0
    %1048 = vmatprep.subr.mxu0 0.0
    %1049 = vmatpush1.msra.mxu0 0.0
    %v1050 = vand.u32 %v910, 4294901760
    %v1051 = vsub.f32 %v910, %v1050
    %v1052 = vand.u32 %v1051, 4294901760
    %v1053 = vsub.f32 %v1051, %v1052
    %v1054 = vand.u32 %v1053, 4294901760
    %1055 = vmatprep.subr.mxu0 %v1054
    %v1056 = vand.u32 %v909, 4294901760
    %v1057 = vsub.f32 %v909, %v1056
    %v1058 = vand.u32 %v1057, 4294901760
    %v1059 = vsub.f32 %v1057, %v1058
    %v1060 = vand.u32 %v1059, 4294901760
    %1061 = vmatpush1.msra.mxu0 %v1060
    %v1062 = vand.u32 %v908, 4294901760
    %v1063 = vsub.f32 %v908, %v1062
    %v1064 = vand.u32 %v1063, 4294901760
    %v1065 = vsub.f32 %v1063, %v1064
    %v1066 = vand.u32 %v1065, 4294901760
    %1067 = vmatprep.subr.mxu0 %v1066
    %v1068 = vand.u32 %v907, 4294901760
    %v1069 = vsub.f32 %v907, %v1068
    %v1070 = vand.u32 %v1069, 4294901760
    %v1071 = vsub.f32 %v1069, %v1070
    %v1072 = vand.u32 %v1071, 4294901760
    %1073 = vmatpush1.msra.mxu0 %v1072
    %v1074 = vand.u32 %v906, 4294901760
    %v1075 = vsub.f32 %v906, %v1074
    %v1076 = vand.u32 %v1075, 4294901760
    %v1077 = vsub.f32 %v1075, %v1076
    %v1078 = vand.u32 %v1077, 4294901760
    %1079 = vmatprep.subr.mxu0 %v1078
    %v1080 = vand.u32 %v905, 4294901760
    %v1081 = vsub.f32 %v905, %v1080
    %v1082 = vand.u32 %v1081, 4294901760
    %v1083 = vsub.f32 %v1081, %v1082
    %v1084 = vand.u32 %v1083, 4294901760
    %1085 = vmatpush1.msra.mxu0 %v1084
    %v1086 = vand.u32 %v904, 4294901760
    %v1087 = vsub.f32 %v904, %v1086
    %v1088 = vand.u32 %v1087, 4294901760
    %v1089 = vsub.f32 %v1087, %v1088
    %v1090 = vand.u32 %v1089, 4294901760
    %1091 = vmatprep.subr.mxu0 %v1090
    %v1092 = vand.u32 %v903, 4294901760
    %v1093 = vsub.f32 %v903, %v1092
    %v1094 = vand.u32 %v1093, 4294901760
    %v1095 = vsub.f32 %v1093, %v1094
    %v1096 = vand.u32 %v1095, 4294901760
    %1097 = vmatpush1.msra.mxu0 %v1096
    %1098 = vmatprep.subr.mxu0 0.0
    %1099 = vmatpush2.msra.mxu0 0.0
    %1100 = vmatprep.subr.mxu0 0.0
    %1101 = vmatpush2.msra.mxu0 0.0
    %1102 = vmatprep.subr.mxu0 0.0
    %1103 = vmatpush2.msra.mxu0 0.0
    %1104 = vmatprep.subr.mxu0 0.0
    %1105 = vmatpush2.msra.mxu0 0.0
    %1106 = vmatprep.subr.mxu0 0.0
    %1107 = vmatpush2.msra.mxu0 0.0
    %1108 = vmatprep.subr.mxu0 0.0
    %1109 = vmatpush2.msra.mxu0 0.0
    %1110 = vmatprep.subr.mxu0 0.0
    %1111 = vmatpush2.msra.mxu0 0.0
    %1112 = vmatprep.subr.mxu0 0.0
    %1113 = vmatpush2.msra.mxu0 0.0
    %1114 = vmatprep.subr.mxu0 0.0
    %1115 = vmatpush2.msra.mxu0 0.0
    %1116 = vmatprep.subr.mxu0 0.0
    %1117 = vmatpush2.msra.mxu0 0.0
    %1118 = vmatprep.subr.mxu0 0.0
    %1119 = vmatpush2.msra.mxu0 0.0
    %1120 = vmatprep.subr.mxu0 0.0
    %1121 = vmatpush2.msra.mxu0 0.0
    %1122 = vmatprep.subr.mxu0 0.0
    %1123 = vmatpush2.msra.mxu0 0.0
    %1124 = vmatprep.subr.mxu0 0.0
    %1125 = vmatpush2.msra.mxu0 0.0
    %1126 = vmatprep.subr.mxu0 0.0
    %1127 = vmatpush2.msra.mxu0 0.0
    %1128 = vmatprep.subr.mxu0 0.0
    %1129 = vmatpush2.msra.mxu0 0.0
    %1130 = vmatprep.mubr.f32.mxu0 0.0
    %v1131 = vand.u32 %v926, 4294901760
    %1132 = vmatmul.mubr.f32.gmra.mxu0 %v1131
    %v1133 = vpop.f32.mrf.mxu0
    %v1134 = vadd.f32 %v1011, %v1133
    %v1135 = vpop.f32.mrf.mxu0
    %v1136 = vadd.f32 %v1013, %v1135
    %1137 = vmatprep.mubr.f32.mxu0 0.0
    %v1138 = vand.u32 %v929, 4294901760
    %1139 = vmatmul.mubr.f32.gmra.mxu0 %v1138
    %v1140 = vpop.f32.mrf.mxu0
    %v1141 = vadd.f32 %v1022, %v1140
    %v1142 = vpop.f32.mrf.mxu0
    %v1143 = vadd.f32 %v1024, %v1142
    %1144 = vdwg.mxu0
    %1145 = vmatprep.subr.mxu0 0.0
    %1146 = vmatpush1.msra.mxu0 0.0
    %1147 = vmatprep.subr.mxu0 0.0
    %1148 = vmatpush1.msra.mxu0 0.0
    %1149 = vmatprep.subr.mxu0 0.0
    %1150 = vmatpush1.msra.mxu0 0.0
    %1151 = vmatprep.subr.mxu0 0.0
    %1152 = vmatpush1.msra.mxu0 0.0
    %1153 = vmatprep.subr.mxu0 0.0
    %1154 = vmatpush1.msra.mxu0 0.0
    %1155 = vmatprep.subr.mxu0 0.0
    %1156 = vmatpush1.msra.mxu0 0.0
    %1157 = vmatprep.subr.mxu0 0.0
    %1158 = vmatpush1.msra.mxu0 0.0
    %1159 = vmatprep.subr.mxu0 0.0
    %1160 = vmatpush1.msra.mxu0 0.0
    %1161 = vmatprep.subr.mxu0 0.0
    %1162 = vmatpush1.msra.mxu0 0.0
    %1163 = vmatprep.subr.mxu0 0.0
    %1164 = vmatpush1.msra.mxu0 0.0
    %1165 = vmatprep.subr.mxu0 0.0
    %1166 = vmatpush1.msra.mxu0 0.0
    %1167 = vmatprep.subr.mxu0 0.0
    %1168 = vmatpush1.msra.mxu0 0.0
    %v1169 = vand.u32 %v910, 4294901760
    %v1170 = vsub.f32 %v910, %v1169
    %1171 = vmatprep.subr.mxu0 %v1170
    %v1172 = vand.u32 %v909, 4294901760
    %v1173 = vsub.f32 %v909, %v1172
    %1174 = vmatpush1.msra.mxu0 %v1173
    %v1175 = vand.u32 %v908, 4294901760
    %v1176 = vsub.f32 %v908, %v1175
    %1177 = vmatprep.subr.mxu0 %v1176
    %v1178 = vand.u32 %v907, 4294901760
    %v1179 = vsub.f32 %v907, %v1178
    %1180 = vmatpush1.msra.mxu0 %v1179
    %v1181 = vand.u32 %v906, 4294901760
    %v1182 = vsub.f32 %v906, %v1181
    %1183 = vmatprep.subr.mxu0 %v1182
    %v1184 = vand.u32 %v905, 4294901760
    %v1185 = vsub.f32 %v905, %v1184
    %1186 = vmatpush1.msra.mxu0 %v1185
    %v1187 = vand.u32 %v904, 4294901760
    %v1188 = vsub.f32 %v904, %v1187
    %1189 = vmatprep.subr.mxu0 %v1188
    %v1190 = vand.u32 %v903, 4294901760
    %v1191 = vsub.f32 %v903, %v1190
    %1192 = vmatpush1.msra.mxu0 %v1191
    %1193 = vmatprep.subr.mxu0 0.0
    %1194 = vmatpush2.msra.mxu0 0.0
    %1195 = vmatprep.subr.mxu0 0.0
    %1196 = vmatpush2.msra.mxu0 0.0
    %1197 = vmatprep.subr.mxu0 0.0
    %1198 = vmatpush2.msra.mxu0 0.0
    %1199 = vmatprep.subr.mxu0 0.0
    %1200 = vmatpush2.msra.mxu0 0.0
    %1201 = vmatprep.subr.mxu0 0.0
    %1202 = vmatpush2.msra.mxu0 0.0
    %1203 = vmatprep.subr.mxu0 0.0
    %1204 = vmatpush2.msra.mxu0 0.0
    %1205 = vmatprep.subr.mxu0 0.0
    %1206 = vmatpush2.msra.mxu0 0.0
    %1207 = vmatprep.subr.mxu0 0.0
    %1208 = vmatpush2.msra.mxu0 0.0
    %1209 = vmatprep.subr.mxu0 0.0
    %1210 = vmatpush2.msra.mxu0 0.0
    %1211 = vmatprep.subr.mxu0 0.0
    %1212 = vmatpush2.msra.mxu0 0.0
    %1213 = vmatprep.subr.mxu0 0.0
    %1214 = vmatpush2.msra.mxu0 0.0
    %1215 = vmatprep.subr.mxu0 0.0
    %1216 = vmatpush2.msra.mxu0 0.0
    %1217 = vmatprep.subr.mxu0 0.0
    %1218 = vmatpush2.msra.mxu0 0.0
    %1219 = vmatprep.subr.mxu0 0.0
    %1220 = vmatpush2.msra.mxu0 0.0
    %1221 = vmatprep.subr.mxu0 0.0
    %1222 = vmatpush2.msra.mxu0 0.0
    %1223 = vmatprep.subr.mxu0 0.0
    %1224 = vmatpush2.msra.mxu0 0.0
    %1225 = vmatprep.mubr.f32.mxu0 0.0
    %v1226 = vand.u32 %v926, 4294901760
    %v1227 = vsub.f32 %v926, %v1226
    %1228 = vmatmul.mubr.f32.gmra.mxu0 %v1227
    %v1229 = vpop.f32.mrf.mxu0
    %v1230 = vadd.f32 %v1134, %v1229
    %v1231 = vpop.f32.mrf.mxu0
    %v1232 = vadd.f32 %v1136, %v1231
    %1233 = vmatprep.mubr.f32.mxu0 0.0
    %v1234 = vand.u32 %v929, 4294901760
    %v1235 = vsub.f32 %v929, %v1234
    %1236 = vmatmul.mubr.f32.gmra.mxu0 %v1235
    %v1237 = vpop.f32.mrf.mxu0
    %v1238 = vadd.f32 %v1141, %v1237
    %v1239 = vpop.f32.mrf.mxu0
    %v1240 = vadd.f32 %v1143, %v1239
    %1241 = vdwg.mxu0
    %1242 = vmatprep.subr.mxu0 0.0
    %1243 = vmatpush1.msra.mxu0 0.0
    %1244 = vmatprep.subr.mxu0 0.0
    %1245 = vmatpush1.msra.mxu0 0.0
    %1246 = vmatprep.subr.mxu0 0.0
    %1247 = vmatpush1.msra.mxu0 0.0
    %1248 = vmatprep.subr.mxu0 0.0
    %1249 = vmatpush1.msra.mxu0 0.0
    %1250 = vmatprep.subr.mxu0 0.0
    %1251 = vmatpush1.msra.mxu0 0.0
    %1252 = vmatprep.subr.mxu0 0.0
    %1253 = vmatpush1.msra.mxu0 0.0
    %1254 = vmatprep.subr.mxu0 0.0
    %1255 = vmatpush1.msra.mxu0 0.0
    %1256 = vmatprep.subr.mxu0 0.0
    %1257 = vmatpush1.msra.mxu0 0.0
    %1258 = vmatprep.subr.mxu0 0.0
    %1259 = vmatpush1.msra.mxu0 0.0
    %1260 = vmatprep.subr.mxu0 0.0
    %1261 = vmatpush1.msra.mxu0 0.0
    %1262 = vmatprep.subr.mxu0 0.0
    %1263 = vmatpush1.msra.mxu0 0.0
    %1264 = vmatprep.subr.mxu0 0.0
    %1265 = vmatpush1.msra.mxu0 0.0
    %v1266 = vand.u32 %v910, 4294901760
    %1267 = vmatprep.subr.mxu0 %v1266
    %v1268 = vand.u32 %v909, 4294901760
    %1269 = vmatpush1.msra.mxu0 %v1268
    %v1270 = vand.u32 %v908, 4294901760
    %1271 = vmatprep.subr.mxu0 %v1270
    %v1272 = vand.u32 %v907, 4294901760
    %1273 = vmatpush1.msra.mxu0 %v1272
    %v1274 = vand.u32 %v906, 4294901760
    %1275 = vmatprep.subr.mxu0 %v1274
    %v1276 = vand.u32 %v905, 4294901760
    %1277 = vmatpush1.msra.mxu0 %v1276
    %v1278 = vand.u32 %v904, 4294901760
    %1279 = vmatprep.subr.mxu0 %v1278
    %v1280 = vand.u32 %v903, 4294901760
    %1281 = vmatpush1.msra.mxu0 %v1280
    %1282 = vmatprep.subr.mxu0 0.0
    %1283 = vmatpush2.msra.mxu0 0.0
    %1284 = vmatprep.subr.mxu0 0.0
    %1285 = vmatpush2.msra.mxu0 0.0
    %1286 = vmatprep.subr.mxu0 0.0
    %1287 = vmatpush2.msra.mxu0 0.0
    %1288 = vmatprep.subr.mxu0 0.0
    %1289 = vmatpush2.msra.mxu0 0.0
    %1290 = vmatprep.subr.mxu0 0.0
    %1291 = vmatpush2.msra.mxu0 0.0
    %1292 = vmatprep.subr.mxu0 0.0
    %1293 = vmatpush2.msra.mxu0 0.0
    %1294 = vmatprep.subr.mxu0 0.0
    %1295 = vmatpush2.msra.mxu0 0.0
    %1296 = vmatprep.subr.mxu0 0.0
    %1297 = vmatpush2.msra.mxu0 0.0
    %1298 = vmatprep.subr.mxu0 0.0
    %1299 = vmatpush2.msra.mxu0 0.0
    %1300 = vmatprep.subr.mxu0 0.0
    %1301 = vmatpush2.msra.mxu0 0.0
    %1302 = vmatprep.subr.mxu0 0.0
    %1303 = vmatpush2.msra.mxu0 0.0
    %1304 = vmatprep.subr.mxu0 0.0
    %1305 = vmatpush2.msra.mxu0 0.0
    %1306 = vmatprep.subr.mxu0 0.0
    %1307 = vmatpush2.msra.mxu0 0.0
    %1308 = vmatprep.subr.mxu0 0.0
    %1309 = vmatpush2.msra.mxu0 0.0
    %1310 = vmatprep.subr.mxu0 0.0
    %1311 = vmatpush2.msra.mxu0 0.0
    %1312 = vmatprep.subr.mxu0 0.0
    %1313 = vmatpush2.msra.mxu0 0.0
    %1314 = vmatprep.mubr.f32.mxu0 0.0
    %v1315 = vand.u32 %v926, 4294901760
    %v1316 = vsub.f32 %v926, %v1315
    %v1317 = vand.u32 %v1316, 4294901760
    %1318 = vmatmul.mubr.f32.gmra.mxu0 %v1317
    %v1319 = vpop.f32.mrf.mxu0
    %v1320 = vadd.f32 %v1230, %v1319
    %v1321 = vpop.f32.mrf.mxu0
    %v1322 = vadd.f32 %v1232, %v1321
    %1323 = vmatprep.mubr.f32.mxu0 0.0
    %v1324 = vand.u32 %v929, 4294901760
    %v1325 = vsub.f32 %v929, %v1324
    %v1326 = vand.u32 %v1325, 4294901760
    %1327 = vmatmul.mubr.f32.gmra.mxu0 %v1326
    %v1328 = vpop.f32.mrf.mxu0
    %v1329 = vadd.f32 %v1238, %v1328
    %v1330 = vpop.f32.mrf.mxu0
    %v1331 = vadd.f32 %v1240, %v1330
    %1332 = vdwg.mxu0
    %1333 = vmatprep.subr.mxu0 0.0
    %1334 = vmatpush1.msra.mxu0 0.0
    %1335 = vmatprep.subr.mxu0 0.0
    %1336 = vmatpush1.msra.mxu0 0.0
    %1337 = vmatprep.subr.mxu0 0.0
    %1338 = vmatpush1.msra.mxu0 0.0
    %1339 = vmatprep.subr.mxu0 0.0
    %1340 = vmatpush1.msra.mxu0 0.0
    %1341 = vmatprep.subr.mxu0 0.0
    %1342 = vmatpush1.msra.mxu0 0.0
    %1343 = vmatprep.subr.mxu0 0.0
    %1344 = vmatpush1.msra.mxu0 0.0
    %1345 = vmatprep.subr.mxu0 0.0
    %1346 = vmatpush1.msra.mxu0 0.0
    %1347 = vmatprep.subr.mxu0 0.0
    %1348 = vmatpush1.msra.mxu0 0.0
    %1349 = vmatprep.subr.mxu0 0.0
    %1350 = vmatpush1.msra.mxu0 0.0
    %1351 = vmatprep.subr.mxu0 0.0
    %1352 = vmatpush1.msra.mxu0 0.0
    %1353 = vmatprep.subr.mxu0 0.0
    %1354 = vmatpush1.msra.mxu0 0.0
    %1355 = vmatprep.subr.mxu0 0.0
    %1356 = vmatpush1.msra.mxu0 0.0
    %v1357 = vand.u32 %v910, 4294901760
    %v1358 = vsub.f32 %v910, %v1357
    %v1359 = vand.u32 %v1358, 4294901760
    %1360 = vmatprep.subr.mxu0 %v1359
    %v1361 = vand.u32 %v909, 4294901760
    %v1362 = vsub.f32 %v909, %v1361
    %v1363 = vand.u32 %v1362, 4294901760
    %1364 = vmatpush1.msra.mxu0 %v1363
    %v1365 = vand.u32 %v908, 4294901760
    %v1366 = vsub.f32 %v908, %v1365
    %v1367 = vand.u32 %v1366, 4294901760
    %1368 = vmatprep.subr.mxu0 %v1367
    %v1369 = vand.u32 %v907, 4294901760
    %v1370 = vsub.f32 %v907, %v1369
    %v1371 = vand.u32 %v1370, 4294901760
    %1372 = vmatpush1.msra.mxu0 %v1371
    %v1373 = vand.u32 %v906, 4294901760
    %v1374 = vsub.f32 %v906, %v1373
    %v1375 = vand.u32 %v1374, 4294901760
    %1376 = vmatprep.subr.mxu0 %v1375
    %v1377 = vand.u32 %v905, 4294901760
    %v1378 = vsub.f32 %v905, %v1377
    %v1379 = vand.u32 %v1378, 4294901760
    %1380 = vmatpush1.msra.mxu0 %v1379
    %v1381 = vand.u32 %v904, 4294901760
    %v1382 = vsub.f32 %v904, %v1381
    %v1383 = vand.u32 %v1382, 4294901760
    %1384 = vmatprep.subr.mxu0 %v1383
    %v1385 = vand.u32 %v903, 4294901760
    %v1386 = vsub.f32 %v903, %v1385
    %v1387 = vand.u32 %v1386, 4294901760
    %1388 = vmatpush1.msra.mxu0 %v1387
    %1389 = vmatprep.subr.mxu0 0.0
    %1390 = vmatpush2.msra.mxu0 0.0
    %1391 = vmatprep.subr.mxu0 0.0
    %1392 = vmatpush2.msra.mxu0 0.0
    %1393 = vmatprep.subr.mxu0 0.0
    %1394 = vmatpush2.msra.mxu0 0.0
    %1395 = vmatprep.subr.mxu0 0.0
    %1396 = vmatpush2.msra.mxu0 0.0
    %1397 = vmatprep.subr.mxu0 0.0
    %1398 = vmatpush2.msra.mxu0 0.0
    %1399 = vmatprep.subr.mxu0 0.0
    %1400 = vmatpush2.msra.mxu0 0.0
    %1401 = vmatprep.subr.mxu0 0.0
    %1402 = vmatpush2.msra.mxu0 0.0
    %1403 = vmatprep.subr.mxu0 0.0
    %1404 = vmatpush2.msra.mxu0 0.0
    %1405 = vmatprep.subr.mxu0 0.0
    %1406 = vmatpush2.msra.mxu0 0.0
    %1407 = vmatprep.subr.mxu0 0.0
    %1408 = vmatpush2.msra.mxu0 0.0
    %1409 = vmatprep.subr.mxu0 0.0
    %1410 = vmatpush2.msra.mxu0 0.0
    %1411 = vmatprep.subr.mxu0 0.0
    %1412 = vmatpush2.msra.mxu0 0.0
    %1413 = vmatprep.subr.mxu0 0.0
    %1414 = vmatpush2.msra.mxu0 0.0
    %1415 = vmatprep.subr.mxu0 0.0
    %1416 = vmatpush2.msra.mxu0 0.0
    %1417 = vmatprep.subr.mxu0 0.0
    %1418 = vmatpush2.msra.mxu0 0.0
    %1419 = vmatprep.subr.mxu0 0.0
    %1420 = vmatpush2.msra.mxu0 0.0
    %1421 = vmatprep.mubr.f32.mxu0 0.0
    %v1422 = vand.u32 %v926, 4294901760
    %1423 = vmatmul.mubr.f32.gmra.mxu0 %v1422
    %v1424 = vpop.f32.mrf.mxu0
    %v1425 = vadd.f32 %v1320, %v1424
    %v1426 = vpop.f32.mrf.mxu0
    %v1427 = vadd.f32 %v1322, %v1426
    %1428 = vmatprep.mubr.f32.mxu0 0.0
    %v1429 = vand.u32 %v929, 4294901760
    %1430 = vmatmul.mubr.f32.gmra.mxu0 %v1429
    %v1431 = vpop.f32.mrf.mxu0
    %v1432 = vadd.f32 %v1329, %v1431
    %v1433 = vpop.f32.mrf.mxu0
    %v1434 = vadd.f32 %v1331, %v1433
    %1435 = vdwg.mxu0
    %1436 = vmatprep.subr.mxu0 0.0
    %1437 = vmatpush1.msra.mxu0 0.0
    %1438 = vmatprep.subr.mxu0 0.0
    %1439 = vmatpush1.msra.mxu0 0.0
    %1440 = vmatprep.subr.mxu0 0.0
    %1441 = vmatpush1.msra.mxu0 0.0
    %1442 = vmatprep.subr.mxu0 0.0
    %1443 = vmatpush1.msra.mxu0 0.0
    %1444 = vmatprep.subr.mxu0 0.0
    %1445 = vmatpush1.msra.mxu0 0.0
    %1446 = vmatprep.subr.mxu0 0.0
    %1447 = vmatpush1.msra.mxu0 0.0
    %1448 = vmatprep.subr.mxu0 0.0
    %1449 = vmatpush1.msra.mxu0 0.0
    %1450 = vmatprep.subr.mxu0 0.0
    %1451 = vmatpush1.msra.mxu0 0.0
    %1452 = vmatprep.subr.mxu0 0.0
    %1453 = vmatpush1.msra.mxu0 0.0
    %1454 = vmatprep.subr.mxu0 0.0
    %1455 = vmatpush1.msra.mxu0 0.0
    %1456 = vmatprep.subr.mxu0 0.0
    %1457 = vmatpush1.msra.mxu0 0.0
    %1458 = vmatprep.subr.mxu0 0.0
    %1459 = vmatpush1.msra.mxu0 0.0
    %v1460 = vand.u32 %v910, 4294901760
    %1461 = vmatprep.subr.mxu0 %v1460
    %v1462 = vand.u32 %v909, 4294901760
    %1463 = vmatpush1.msra.mxu0 %v1462
    %v1464 = vand.u32 %v908, 4294901760
    %1465 = vmatprep.subr.mxu0 %v1464
    %v1466 = vand.u32 %v907, 4294901760
    %1467 = vmatpush1.msra.mxu0 %v1466
    %v1468 = vand.u32 %v906, 4294901760
    %1469 = vmatprep.subr.mxu0 %v1468
    %v1470 = vand.u32 %v905, 4294901760
    %1471 = vmatpush1.msra.mxu0 %v1470
    %v1472 = vand.u32 %v904, 4294901760
    %1473 = vmatprep.subr.mxu0 %v1472
    %v1474 = vand.u32 %v903, 4294901760
    %1475 = vmatpush1.msra.mxu0 %v1474
    %1476 = vmatprep.subr.mxu0 0.0
    %1477 = vmatpush2.msra.mxu0 0.0
    %1478 = vmatprep.subr.mxu0 0.0
    %1479 = vmatpush2.msra.mxu0 0.0
    %1480 = vmatprep.subr.mxu0 0.0
    %1481 = vmatpush2.msra.mxu0 0.0
    %1482 = vmatprep.subr.mxu0 0.0
    %1483 = vmatpush2.msra.mxu0 0.0
    %1484 = vmatprep.subr.mxu0 0.0
    %1485 = vmatpush2.msra.mxu0 0.0
    %1486 = vmatprep.subr.mxu0 0.0
    %1487 = vmatpush2.msra.mxu0 0.0
    %1488 = vmatprep.subr.mxu0 0.0
    %1489 = vmatpush2.msra.mxu0 0.0
    %1490 = vmatprep.subr.mxu0 0.0
    %1491 = vmatpush2.msra.mxu0 0.0
    %1492 = vmatprep.subr.mxu0 0.0
    %1493 = vmatpush2.msra.mxu0 0.0
    %1494 = vmatprep.subr.mxu0 0.0
    %1495 = vmatpush2.msra.mxu0 0.0
    %1496 = vmatprep.subr.mxu0 0.0
    %1497 = vmatpush2.msra.mxu0 0.0
    %1498 = vmatprep.subr.mxu0 0.0
    %1499 = vmatpush2.msra.mxu0 0.0
    %1500 = vmatprep.subr.mxu0 0.0
    %1501 = vmatpush2.msra.mxu0 0.0
    %1502 = vmatprep.subr.mxu0 0.0
    %1503 = vmatpush2.msra.mxu0 0.0
    %1504 = vmatprep.subr.mxu0 0.0
    %1505 = vmatpush2.msra.mxu0 0.0
    %1506 = vmatprep.subr.mxu0 0.0
    %1507 = vmatpush2.msra.mxu0 0.0
    %1508 = vmatprep.mubr.f32.mxu0 0.0
    %v1509 = vand.u32 %v926, 4294901760
    %1510 = vmatmul.mubr.f32.gmra.mxu0 %v1509
    %v1511 = vpop.f32.mrf.mxu0
    %v1512 = vadd.f32 %v1425, %v1511
    %v1513 = vpop.f32.mrf.mxu0
    %v1514 = vadd.f32 %v1427, %v1513
    %1515 = vmatprep.mubr.f32.mxu0 0.0
    %v1516 = vand.u32 %v929, 4294901760
    %1517 = vmatmul.mubr.f32.gmra.mxu0 %v1516
    %v1518 = vpop.f32.mrf.mxu0
    %v1519 = vadd.f32 %v1432, %v1518
    %v1520 = vpop.f32.mrf.mxu0
    %v1521 = vadd.f32 %v1434, %v1520
    %1522 = vdwg.mxu0
    %v1523 = vmax.f32 %v1512, 0.0
    %v1524 = vmax.f32 %v1514, 0.0
    %v1525 = vmax.f32 %v1519, 0.0
    %v1526 = vmax.f32 %v1521, 0.0
    %v1527 = vld [vmem:[%s7] sm:$0x1]
    %vm1528 = vcmask 130048
    %v1530 = vsel %vm1528, %v1527, 0
    %1532 = vmatprep.subr.mxu0 0.0
    %1533 = vmatpush1.msra.mxu0 0.0
    %1534 = vmatprep.subr.mxu0 0.0
    %1535 = vmatpush1.msra.mxu0 0.0
    %1536 = vmatprep.subr.mxu0 0.0
    %1537 = vmatpush1.msra.mxu0 0.0
    %1538 = vmatprep.subr.mxu0 0.0
    %1539 = vmatpush1.msra.mxu0 0.0
    %1540 = vmatprep.subr.mxu0 0.0
    %1541 = vmatpush1.msra.mxu0 0.0
    %1542 = vmatprep.subr.mxu0 0.0
    %1543 = vmatpush1.msra.mxu0 0.0
    %1544 = vmatprep.subr.mxu0 0.0
    %1545 = vmatpush1.msra.mxu0 0.0
    %1546 = vmatprep.subr.mxu0 0.0
    %1547 = vmatpush1.msra.mxu0 0.0
    %1548 = vmatprep.subr.mxu0 0.0
    %1549 = vmatpush1.msra.mxu0 0.0
    %1550 = vmatprep.subr.mxu0 0.0
    %1551 = vmatpush1.msra.mxu0 0.0
    %1552 = vmatprep.subr.mxu0 0.0
    %1553 = vmatpush1.msra.mxu0 0.0
    %1554 = vmatprep.subr.mxu0 0.0
    %1555 = vmatpush1.msra.mxu0 0.0
    %1556 = vmatprep.subr.mxu0 0.0
    %1557 = vmatpush1.msra.mxu0 0.0
    %1558 = vmatprep.subr.mxu0 0.0
    %1559 = vmatpush1.msra.mxu0 0.0
    %v1560 = vand.u32 %v1526, 4294901760
    %1561 = vmatprep.subr.mxu0 %v1560
    %v1562 = vand.u32 %v1525, 4294901760
    %1563 = vmatpush1.msra.mxu0 %v1562
    %v1564 = vand.u32 %v1524, 4294901760
    %1565 = vmatprep.subr.mxu0 %v1564
    %v1566 = vand.u32 %v1523, 4294901760
    %1567 = vmatpush1.msra.mxu0 %v1566
    %1568 = vmatprep.subr.mxu0 0.0
    %1569 = vmatpush2.msra.mxu0 0.0
    %1570 = vmatprep.subr.mxu0 0.0
    %1571 = vmatpush2.msra.mxu0 0.0
    %1572 = vmatprep.subr.mxu0 0.0
    %1573 = vmatpush2.msra.mxu0 0.0
    %1574 = vmatprep.subr.mxu0 0.0
    %1575 = vmatpush2.msra.mxu0 0.0
    %1576 = vmatprep.subr.mxu0 0.0
    %1577 = vmatpush2.msra.mxu0 0.0
    %1578 = vmatprep.subr.mxu0 0.0
    %1579 = vmatpush2.msra.mxu0 0.0
    %1580 = vmatprep.subr.mxu0 0.0
    %1581 = vmatpush2.msra.mxu0 0.0
    %1582 = vmatprep.subr.mxu0 0.0
    %1583 = vmatpush2.msra.mxu0 0.0
    %1584 = vmatprep.subr.mxu0 0.0
    %1585 = vmatpush2.msra.mxu0 0.0
    %1586 = vmatprep.subr.mxu0 0.0
    %1587 = vmatpush2.msra.mxu0 0.0
    %1588 = vmatprep.subr.mxu0 0.0
    %1589 = vmatpush2.msra.mxu0 0.0
    %1590 = vmatprep.subr.mxu0 0.0
    %1591 = vmatpush2.msra.mxu0 0.0
    %1592 = vmatprep.subr.mxu0 0.0
    %1593 = vmatpush2.msra.mxu0 0.0
    %1594 = vmatprep.subr.mxu0 0.0
    %1595 = vmatpush2.msra.mxu0 0.0
    %1596 = vmatprep.subr.mxu0 0.0
    %1597 = vmatpush2.msra.mxu0 0.0
    %1598 = vmatprep.subr.mxu0 0.0
    %1599 = vmatpush2.msra.mxu0 0.0
    %1600 = vmatprep.mubr.f32.mxu0 0.0
    %v1601 = vand.u32 %v1530, 4294901760
    %v1602 = vsub.f32 %v1530, %v1601
    %v1603 = vand.u32 %v1602, 4294901760
    %v1604 = vsub.f32 %v1602, %v1603
    %v1605 = vand.u32 %v1604, 4294901760
    %1606 = vmatmul.mubr.f32.gmra.mxu0 %v1605
    %v1607 = vpop.f32.mrf.mxu0
    %v1608 = vadd.f32 0.0, %v1607
    %v1609 = vpop.f32.mrf.mxu0
    %v1610 = vadd.f32 0.0, %v1609
    %1611 = vdwg.mxu0
    %1612 = vmatprep.subr.mxu0 0.0
    %1613 = vmatpush1.msra.mxu0 0.0
    %1614 = vmatprep.subr.mxu0 0.0
    %1615 = vmatpush1.msra.mxu0 0.0
    %1616 = vmatprep.subr.mxu0 0.0
    %1617 = vmatpush1.msra.mxu0 0.0
    %1618 = vmatprep.subr.mxu0 0.0
    %1619 = vmatpush1.msra.mxu0 0.0
    %1620 = vmatprep.subr.mxu0 0.0
    %1621 = vmatpush1.msra.mxu0 0.0
    %1622 = vmatprep.subr.mxu0 0.0
    %1623 = vmatpush1.msra.mxu0 0.0
    %1624 = vmatprep.subr.mxu0 0.0
    %1625 = vmatpush1.msra.mxu0 0.0
    %1626 = vmatprep.subr.mxu0 0.0
    %1627 = vmatpush1.msra.mxu0 0.0
    %1628 = vmatprep.subr.mxu0 0.0
    %1629 = vmatpush1.msra.mxu0 0.0
    %1630 = vmatprep.subr.mxu0 0.0
    %1631 = vmatpush1.msra.mxu0 0.0
    %1632 = vmatprep.subr.mxu0 0.0
    %1633 = vmatpush1.msra.mxu0 0.0
    %1634 = vmatprep.subr.mxu0 0.0
    %1635 = vmatpush1.msra.mxu0 0.0
    %1636 = vmatprep.subr.mxu0 0.0
    %1637 = vmatpush1.msra.mxu0 0.0
    %1638 = vmatprep.subr.mxu0 0.0
    %1639 = vmatpush1.msra.mxu0 0.0
    %v1640 = vand.u32 %v1526, 4294901760
    %v1641 = vsub.f32 %v1526, %v1640
    %v1642 = vand.u32 %v1641, 4294901760
    %v1643 = vsub.f32 %v1641, %v1642
    %v1644 = vand.u32 %v1643, 4294901760
    %1645 = vmatprep.subr.mxu0 %v1644
    %v1646 = vand.u32 %v1525, 4294901760
    %v1647 = vsub.f32 %v1525, %v1646
    %v1648 = vand.u32 %v1647, 4294901760
    %v1649 = vsub.f32 %v1647, %v1648
    %v1650 = vand.u32 %v1649, 4294901760
    %1651 = vmatpush1.msra.mxu0 %v1650
    %v1652 = vand.u32 %v1524, 4294901760
    %v1653 = vsub.f32 %v1524, %v1652
    %v1654 = vand.u32 %v1653, 4294901760
    %v1655 = vsub.f32 %v1653, %v1654
    %v1656 = vand.u32 %v1655, 4294901760
    %1657 = vmatprep.subr.mxu0 %v1656
    %v1658 = vand.u32 %v1523, 4294901760
    %v1659 = vsub.f32 %v1523, %v1658
    %v1660 = vand.u32 %v1659, 4294901760
    %v1661 = vsub.f32 %v1659, %v1660
    %v1662 = vand.u32 %v1661, 4294901760
    %1663 = vmatpush1.msra.mxu0 %v1662
    %1664 = vmatprep.subr.mxu0 0.0
    %1665 = vmatpush2.msra.mxu0 0.0
    %1666 = vmatprep.subr.mxu0 0.0
    %1667 = vmatpush2.msra.mxu0 0.0
    %1668 = vmatprep.subr.mxu0 0.0
    %1669 = vmatpush2.msra.mxu0 0.0
    %1670 = vmatprep.subr.mxu0 0.0
    %1671 = vmatpush2.msra.mxu0 0.0
    %1672 = vmatprep.subr.mxu0 0.0
    %1673 = vmatpush2.msra.mxu0 0.0
    %1674 = vmatprep.subr.mxu0 0.0
    %1675 = vmatpush2.msra.mxu0 0.0
    %1676 = vmatprep.subr.mxu0 0.0
    %1677 = vmatpush2.msra.mxu0 0.0
    %1678 = vmatprep.subr.mxu0 0.0
    %1679 = vmatpush2.msra.mxu0 0.0
    %1680 = vmatprep.subr.mxu0 0.0
    %1681 = vmatpush2.msra.mxu0 0.0
    %1682 = vmatprep.subr.mxu0 0.0
    %1683 = vmatpush2.msra.mxu0 0.0
    %1684 = vmatprep.subr.mxu0 0.0
    %1685 = vmatpush2.msra.mxu0 0.0
    %1686 = vmatprep.subr.mxu0 0.0
    %1687 = vmatpush2.msra.mxu0 0.0
    %1688 = vmatprep.subr.mxu0 0.0
    %1689 = vmatpush2.msra.mxu0 0.0
    %1690 = vmatprep.subr.mxu0 0.0
    %1691 = vmatpush2.msra.mxu0 0.0
    %1692 = vmatprep.subr.mxu0 0.0
    %1693 = vmatpush2.msra.mxu0 0.0
    %1694 = vmatprep.subr.mxu0 0.0
    %1695 = vmatpush2.msra.mxu0 0.0
    %1696 = vmatprep.mubr.f32.mxu0 0.0
    %v1697 = vand.u32 %v1530, 4294901760
    %1698 = vmatmul.mubr.f32.gmra.mxu0 %v1697
    %v1699 = vpop.f32.mrf.mxu0
    %v1700 = vadd.f32 %v1608, %v1699
    %v1701 = vpop.f32.mrf.mxu0
    %v1702 = vadd.f32 %v1610, %v1701
    %1703 = vdwg.mxu0
    %1704 = vmatprep.subr.mxu0 0.0
    %1705 = vmatpush1.msra.mxu0 0.0
    %1706 = vmatprep.subr.mxu0 0.0
    %1707 = vmatpush1.msra.mxu0 0.0
    %1708 = vmatprep.subr.mxu0 0.0
    %1709 = vmatpush1.msra.mxu0 0.0
    %1710 = vmatprep.subr.mxu0 0.0
    %1711 = vmatpush1.msra.mxu0 0.0
    %1712 = vmatprep.subr.mxu0 0.0
    %1713 = vmatpush1.msra.mxu0 0.0
    %1714 = vmatprep.subr.mxu0 0.0
    %1715 = vmatpush1.msra.mxu0 0.0
    %1716 = vmatprep.subr.mxu0 0.0
    %1717 = vmatpush1.msra.mxu0 0.0
    %1718 = vmatprep.subr.mxu0 0.0
    %1719 = vmatpush1.msra.mxu0 0.0
    %1720 = vmatprep.subr.mxu0 0.0
    %1721 = vmatpush1.msra.mxu0 0.0
    %1722 = vmatprep.subr.mxu0 0.0
    %1723 = vmatpush1.msra.mxu0 0.0
    %1724 = vmatprep.subr.mxu0 0.0
    %1725 = vmatpush1.msra.mxu0 0.0
    %1726 = vmatprep.subr.mxu0 0.0
    %1727 = vmatpush1.msra.mxu0 0.0
    %1728 = vmatprep.subr.mxu0 0.0
    %1729 = vmatpush1.msra.mxu0 0.0
    %1730 = vmatprep.subr.mxu0 0.0
    %1731 = vmatpush1.msra.mxu0 0.0
    %v1732 = vand.u32 %v1526, 4294901760
    %v1733 = vsub.f32 %v1526, %v1732
    %1734 = vmatprep.subr.mxu0 %v1733
    %v1735 = vand.u32 %v1525, 4294901760
    %v1736 = vsub.f32 %v1525, %v1735
    %1737 = vmatpush1.msra.mxu0 %v1736
    %v1738 = vand.u32 %v1524, 4294901760
    %v1739 = vsub.f32 %v1524, %v1738
    %1740 = vmatprep.subr.mxu0 %v1739
    %v1741 = vand.u32 %v1523, 4294901760
    %v1742 = vsub.f32 %v1523, %v1741
    %1743 = vmatpush1.msra.mxu0 %v1742
    %1744 = vmatprep.subr.mxu0 0.0
    %1745 = vmatpush2.msra.mxu0 0.0
    %1746 = vmatprep.subr.mxu0 0.0
    %1747 = vmatpush2.msra.mxu0 0.0
    %1748 = vmatprep.subr.mxu0 0.0
    %1749 = vmatpush2.msra.mxu0 0.0
    %1750 = vmatprep.subr.mxu0 0.0
    %1751 = vmatpush2.msra.mxu0 0.0
    %1752 = vmatprep.subr.mxu0 0.0
    %1753 = vmatpush2.msra.mxu0 0.0
    %1754 = vmatprep.subr.mxu0 0.0
    %1755 = vmatpush2.msra.mxu0 0.0
    %1756 = vmatprep.subr.mxu0 0.0
    %1757 = vmatpush2.msra.mxu0 0.0
    %1758 = vmatprep.subr.mxu0 0.0
    %1759 = vmatpush2.msra.mxu0 0.0
    %1760 = vmatprep.subr.mxu0 0.0
    %1761 = vmatpush2.msra.mxu0 0.0
    %1762 = vmatprep.subr.mxu0 0.0
    %1763 = vmatpush2.msra.mxu0 0.0
    %1764 = vmatprep.subr.mxu0 0.0
    %1765 = vmatpush2.msra.mxu0 0.0
    %1766 = vmatprep.subr.mxu0 0.0
    %1767 = vmatpush2.msra.mxu0 0.0
    %1768 = vmatprep.subr.mxu0 0.0
    %1769 = vmatpush2.msra.mxu0 0.0
    %1770 = vmatprep.subr.mxu0 0.0
    %1771 = vmatpush2.msra.mxu0 0.0
    %1772 = vmatprep.subr.mxu0 0.0
    %1773 = vmatpush2.msra.mxu0 0.0
    %1774 = vmatprep.subr.mxu0 0.0
    %1775 = vmatpush2.msra.mxu0 0.0
    %1776 = vmatprep.mubr.f32.mxu0 0.0
    %v1777 = vand.u32 %v1530, 4294901760
    %v1778 = vsub.f32 %v1530, %v1777
    %1779 = vmatmul.mubr.f32.gmra.mxu0 %v1778
    %v1780 = vpop.f32.mrf.mxu0
    %v1781 = vadd.f32 %v1700, %v1780
    %v1782 = vpop.f32.mrf.mxu0
    %v1783 = vadd.f32 %v1702, %v1782
    %1784 = vdwg.mxu0
    %1785 = vmatprep.subr.mxu0 0.0
    %1786 = vmatpush1.msra.mxu0 0.0
    %1787 = vmatprep.subr.mxu0 0.0
    %1788 = vmatpush1.msra.mxu0 0.0
    %1789 = vmatprep.subr.mxu0 0.0
    %1790 = vmatpush1.msra.mxu0 0.0
    %1791 = vmatprep.subr.mxu0 0.0
    %1792 = vmatpush1.msra.mxu0 0.0
    %1793 = vmatprep.subr.mxu0 0.0
    %1794 = vmatpush1.msra.mxu0 0.0
    %1795 = vmatprep.subr.mxu0 0.0
    %1796 = vmatpush1.msra.mxu0 0.0
    %1797 = vmatprep.subr.mxu0 0.0
    %1798 = vmatpush1.msra.mxu0 0.0
    %1799 = vmatprep.subr.mxu0 0.0
    %1800 = vmatpush1.msra.mxu0 0.0
    %1801 = vmatprep.subr.mxu0 0.0
    %1802 = vmatpush1.msra.mxu0 0.0
    %1803 = vmatprep.subr.mxu0 0.0
    %1804 = vmatpush1.msra.mxu0 0.0
    %1805 = vmatprep.subr.mxu0 0.0
    %1806 = vmatpush1.msra.mxu0 0.0
    %1807 = vmatprep.subr.mxu0 0.0
    %1808 = vmatpush1.msra.mxu0 0.0
    %1809 = vmatprep.subr.mxu0 0.0
    %1810 = vmatpush1.msra.mxu0 0.0
    %1811 = vmatprep.subr.mxu0 0.0
    %1812 = vmatpush1.msra.mxu0 0.0
    %v1813 = vand.u32 %v1526, 4294901760
    %1814 = vmatprep.subr.mxu0 %v1813
    %v1815 = vand.u32 %v1525, 4294901760
    %1816 = vmatpush1.msra.mxu0 %v1815
    %v1817 = vand.u32 %v1524, 4294901760
    %1818 = vmatprep.subr.mxu0 %v1817
    %v1819 = vand.u32 %v1523, 4294901760
    %1820 = vmatpush1.msra.mxu0 %v1819
    %1821 = vmatprep.subr.mxu0 0.0
    %1822 = vmatpush2.msra.mxu0 0.0
    %1823 = vmatprep.subr.mxu0 0.0
    %1824 = vmatpush2.msra.mxu0 0.0
    %1825 = vmatprep.subr.mxu0 0.0
    %1826 = vmatpush2.msra.mxu0 0.0
    %1827 = vmatprep.subr.mxu0 0.0
    %1828 = vmatpush2.msra.mxu0 0.0
    %1829 = vmatprep.subr.mxu0 0.0
    %1830 = vmatpush2.msra.mxu0 0.0
    %1831 = vmatprep.subr.mxu0 0.0
    %1832 = vmatpush2.msra.mxu0 0.0
    %1833 = vmatprep.subr.mxu0 0.0
    %1834 = vmatpush2.msra.mxu0 0.0
    %1835 = vmatprep.subr.mxu0 0.0
    %1836 = vmatpush2.msra.mxu0 0.0
    %1837 = vmatprep.subr.mxu0 0.0
    %1838 = vmatpush2.msra.mxu0 0.0
    %1839 = vmatprep.subr.mxu0 0.0
    %1840 = vmatpush2.msra.mxu0 0.0
    %1841 = vmatprep.subr.mxu0 0.0
    %1842 = vmatpush2.msra.mxu0 0.0
    %1843 = vmatprep.subr.mxu0 0.0
    %1844 = vmatpush2.msra.mxu0 0.0
    %1845 = vmatprep.subr.mxu0 0.0
    %1846 = vmatpush2.msra.mxu0 0.0
    %1847 = vmatprep.subr.mxu0 0.0
    %1848 = vmatpush2.msra.mxu0 0.0
    %1849 = vmatprep.subr.mxu0 0.0
    %1850 = vmatpush2.msra.mxu0 0.0
    %1851 = vmatprep.subr.mxu0 0.0
    %1852 = vmatpush2.msra.mxu0 0.0
    %1853 = vmatprep.mubr.f32.mxu0 0.0
    %v1854 = vand.u32 %v1530, 4294901760
    %v1855 = vsub.f32 %v1530, %v1854
    %v1856 = vand.u32 %v1855, 4294901760
    %1857 = vmatmul.mubr.f32.gmra.mxu0 %v1856
    %v1858 = vpop.f32.mrf.mxu0
    %v1859 = vadd.f32 %v1781, %v1858
    %v1860 = vpop.f32.mrf.mxu0
    %v1861 = vadd.f32 %v1783, %v1860
    %1862 = vdwg.mxu0
    %1863 = vmatprep.subr.mxu0 0.0
    %1864 = vmatpush1.msra.mxu0 0.0
    %1865 = vmatprep.subr.mxu0 0.0
    %1866 = vmatpush1.msra.mxu0 0.0
    %1867 = vmatprep.subr.mxu0 0.0
    %1868 = vmatpush1.msra.mxu0 0.0
    %1869 = vmatprep.subr.mxu0 0.0
    %1870 = vmatpush1.msra.mxu0 0.0
    %1871 = vmatprep.subr.mxu0 0.0
    %1872 = vmatpush1.msra.mxu0 0.0
    %1873 = vmatprep.subr.mxu0 0.0
    %1874 = vmatpush1.msra.mxu0 0.0
    %1875 = vmatprep.subr.mxu0 0.0
    %1876 = vmatpush1.msra.mxu0 0.0
    %1877 = vmatprep.subr.mxu0 0.0
    %1878 = vmatpush1.msra.mxu0 0.0
    %1879 = vmatprep.subr.mxu0 0.0
    %1880 = vmatpush1.msra.mxu0 0.0
    %1881 = vmatprep.subr.mxu0 0.0
    %1882 = vmatpush1.msra.mxu0 0.0
    %1883 = vmatprep.subr.mxu0 0.0
    %1884 = vmatpush1.msra.mxu0 0.0
    %1885 = vmatprep.subr.mxu0 0.0
    %1886 = vmatpush1.msra.mxu0 0.0
    %1887 = vmatprep.subr.mxu0 0.0
    %1888 = vmatpush1.msra.mxu0 0.0
    %1889 = vmatprep.subr.mxu0 0.0
    %1890 = vmatpush1.msra.mxu0 0.0
    %v1891 = vand.u32 %v1526, 4294901760
    %v1892 = vsub.f32 %v1526, %v1891
    %v1893 = vand.u32 %v1892, 4294901760
    %1894 = vmatprep.subr.mxu0 %v1893
    %v1895 = vand.u32 %v1525, 4294901760
    %v1896 = vsub.f32 %v1525, %v1895
    %v1897 = vand.u32 %v1896, 4294901760
    %1898 = vmatpush1.msra.mxu0 %v1897
    %v1899 = vand.u32 %v1524, 4294901760
    %v1900 = vsub.f32 %v1524, %v1899
    %v1901 = vand.u32 %v1900, 4294901760
    %1902 = vmatprep.subr.mxu0 %v1901
    %v1903 = vand.u32 %v1523, 4294901760
    %v1904 = vsub.f32 %v1523, %v1903
    %v1905 = vand.u32 %v1904, 4294901760
    %1906 = vmatpush1.msra.mxu0 %v1905
    %1907 = vmatprep.subr.mxu0 0.0
    %1908 = vmatpush2.msra.mxu0 0.0
    %1909 = vmatprep.subr.mxu0 0.0
    %1910 = vmatpush2.msra.mxu0 0.0
    %1911 = vmatprep.subr.mxu0 0.0
    %1912 = vmatpush2.msra.mxu0 0.0
    %1913 = vmatprep.subr.mxu0 0.0
    %1914 = vmatpush2.msra.mxu0 0.0
    %1915 = vmatprep.subr.mxu0 0.0
    %1916 = vmatpush2.msra.mxu0 0.0
    %1917 = vmatprep.subr.mxu0 0.0
    %1918 = vmatpush2.msra.mxu0 0.0
    %1919 = vmatprep.subr.mxu0 0.0
    %1920 = vmatpush2.msra.mxu0 0.0
    %1921 = vmatprep.subr.mxu0 0.0
    %1922 = vmatpush2.msra.mxu0 0.0
    %1923 = vmatprep.subr.mxu0 0.0
    %1924 = vmatpush2.msra.mxu0 0.0
    %1925 = vmatprep.subr.mxu0 0.0
    %1926 = vmatpush2.msra.mxu0 0.0
    %1927 = vmatprep.subr.mxu0 0.0
    %1928 = vmatpush2.msra.mxu0 0.0
    %1929 = vmatprep.subr.mxu0 0.0
    %1930 = vmatpush2.msra.mxu0 0.0
    %1931 = vmatprep.subr.mxu0 0.0
    %1932 = vmatpush2.msra.mxu0 0.0
    %1933 = vmatprep.subr.mxu0 0.0
    %1934 = vmatpush2.msra.mxu0 0.0
    %1935 = vmatprep.subr.mxu0 0.0
    %1936 = vmatpush2.msra.mxu0 0.0
    %1937 = vmatprep.subr.mxu0 0.0
    %1938 = vmatpush2.msra.mxu0 0.0
    %1939 = vmatprep.mubr.f32.mxu0 0.0
    %v1940 = vand.u32 %v1530, 4294901760
    %1941 = vmatmul.mubr.f32.gmra.mxu0 %v1940
    %v1942 = vpop.f32.mrf.mxu0
    %v1943 = vadd.f32 %v1859, %v1942
    %v1944 = vpop.f32.mrf.mxu0
    %v1945 = vadd.f32 %v1861, %v1944
    %1946 = vdwg.mxu0
    %1947 = vmatprep.subr.mxu0 0.0
    %1948 = vmatpush1.msra.mxu0 0.0
    %1949 = vmatprep.subr.mxu0 0.0
    %1950 = vmatpush1.msra.mxu0 0.0
    %1951 = vmatprep.subr.mxu0 0.0
    %1952 = vmatpush1.msra.mxu0 0.0
    %1953 = vmatprep.subr.mxu0 0.0
    %1954 = vmatpush1.msra.mxu0 0.0
    %1955 = vmatprep.subr.mxu0 0.0
    %1956 = vmatpush1.msra.mxu0 0.0
    %1957 = vmatprep.subr.mxu0 0.0
    %1958 = vmatpush1.msra.mxu0 0.0
    %1959 = vmatprep.subr.mxu0 0.0
    %1960 = vmatpush1.msra.mxu0 0.0
    %1961 = vmatprep.subr.mxu0 0.0
    %1962 = vmatpush1.msra.mxu0 0.0
    %1963 = vmatprep.subr.mxu0 0.0
    %1964 = vmatpush1.msra.mxu0 0.0
    %1965 = vmatprep.subr.mxu0 0.0
    %1966 = vmatpush1.msra.mxu0 0.0
    %1967 = vmatprep.subr.mxu0 0.0
    %1968 = vmatpush1.msra.mxu0 0.0
    %1969 = vmatprep.subr.mxu0 0.0
    %1970 = vmatpush1.msra.mxu0 0.0
    %1971 = vmatprep.subr.mxu0 0.0
    %1972 = vmatpush1.msra.mxu0 0.0
    %1973 = vmatprep.subr.mxu0 0.0
    %1974 = vmatpush1.msra.mxu0 0.0
    %v1975 = vand.u32 %v1526, 4294901760
    %1976 = vmatprep.subr.mxu0 %v1975
    %v1977 = vand.u32 %v1525, 4294901760
    %1978 = vmatpush1.msra.mxu0 %v1977
    %v1979 = vand.u32 %v1524, 4294901760
    %1980 = vmatprep.subr.mxu0 %v1979
    %v1981 = vand.u32 %v1523, 4294901760
    %1982 = vmatpush1.msra.mxu0 %v1981
    %1983 = vmatprep.subr.mxu0 0.0
    %1984 = vmatpush2.msra.mxu0 0.0
    %1985 = vmatprep.subr.mxu0 0.0
    %1986 = vmatpush2.msra.mxu0 0.0
    %1987 = vmatprep.subr.mxu0 0.0
    %1988 = vmatpush2.msra.mxu0 0.0
    %1989 = vmatprep.subr.mxu0 0.0
    %1990 = vmatpush2.msra.mxu0 0.0
    %1991 = vmatprep.subr.mxu0 0.0
    %1992 = vmatpush2.msra.mxu0 0.0
    %1993 = vmatprep.subr.mxu0 0.0
    %1994 = vmatpush2.msra.mxu0 0.0
    %1995 = vmatprep.subr.mxu0 0.0
    %1996 = vmatpush2.msra.mxu0 0.0
    %1997 = vmatprep.subr.mxu0 0.0
    %1998 = vmatpush2.msra.mxu0 0.0
    %1999 = vmatprep.subr.mxu0 0.0
    %2000 = vmatpush2.msra.mxu0 0.0
    %2001 = vmatprep.subr.mxu0 0.0
    %2002 = vmatpush2.msra.mxu0 0.0
    %2003 = vmatprep.subr.mxu0 0.0
    %2004 = vmatpush2.msra.mxu0 0.0
    %2005 = vmatprep.subr.mxu0 0.0
    %2006 = vmatpush2.msra.mxu0 0.0
    %2007 = vmatprep.subr.mxu0 0.0
    %2008 = vmatpush2.msra.mxu0 0.0
    %2009 = vmatprep.subr.mxu0 0.0
    %2010 = vmatpush2.msra.mxu0 0.0
    %2011 = vmatprep.subr.mxu0 0.0
    %2012 = vmatpush2.msra.mxu0 0.0
    %2013 = vmatprep.subr.mxu0 0.0
    %2014 = vmatpush2.msra.mxu0 0.0
    %2015 = vmatprep.mubr.f32.mxu0 0.0
    %v2016 = vand.u32 %v1530, 4294901760
    %2017 = vmatmul.mubr.f32.gmra.mxu0 %v2016
    %v2018 = vpop.f32.mrf.mxu0
    %v2019 = vadd.f32 %v1943, %v2018
    %v2020 = vpop.f32.mrf.mxu0
    %v2021 = vadd.f32 %v1945, %v2020
    %2022 = vdwg.mxu0
    %v2023 = vmul.f32 %v1523, %v1523
    %v2024 = vmul.f32 %v1524, %v1524
    %v2025 = vmul.f32 %v1525, %v1525
    %v2026 = vmul.f32 %v1526, %v1526
    %v2028 = vsel %vm1528, 1.0, 0
    %2030 = vmatprep.subr.mxu0 0.0
    %2031 = vmatpush1.msra.mxu0 0.0
    %2032 = vmatprep.subr.mxu0 0.0
    %2033 = vmatpush1.msra.mxu0 0.0
    %2034 = vmatprep.subr.mxu0 0.0
    %2035 = vmatpush1.msra.mxu0 0.0
    %2036 = vmatprep.subr.mxu0 0.0
    %2037 = vmatpush1.msra.mxu0 0.0
    %2038 = vmatprep.subr.mxu0 0.0
    %2039 = vmatpush1.msra.mxu0 0.0
    %2040 = vmatprep.subr.mxu0 0.0
    %2041 = vmatpush1.msra.mxu0 0.0
    %2042 = vmatprep.subr.mxu0 0.0
    %2043 = vmatpush1.msra.mxu0 0.0
    %2044 = vmatprep.subr.mxu0 0.0
    %2045 = vmatpush1.msra.mxu0 0.0
    %2046 = vmatprep.subr.mxu0 0.0
    %2047 = vmatpush1.msra.mxu0 0.0
    %2048 = vmatprep.subr.mxu0 0.0
    %2049 = vmatpush1.msra.mxu0 0.0
    %2050 = vmatprep.subr.mxu0 0.0
    %2051 = vmatpush1.msra.mxu0 0.0
    %2052 = vmatprep.subr.mxu0 0.0
    %2053 = vmatpush1.msra.mxu0 0.0
    %2054 = vmatprep.subr.mxu0 0.0
    %2055 = vmatpush1.msra.mxu0 0.0
    %2056 = vmatprep.subr.mxu0 0.0
    %2057 = vmatpush1.msra.mxu0 0.0
    %v2058 = vand.u32 %v2026, 4294901760
    %2059 = vmatprep.subr.mxu0 %v2058
    %v2060 = vand.u32 %v2025, 4294901760
    %2061 = vmatpush1.msra.mxu0 %v2060
    %v2062 = vand.u32 %v2024, 4294901760
    %2063 = vmatprep.subr.mxu0 %v2062
    %v2064 = vand.u32 %v2023, 4294901760
    %2065 = vmatpush1.msra.mxu0 %v2064
    %2066 = vmatprep.subr.mxu0 0.0
    %2067 = vmatpush2.msra.mxu0 0.0
    %2068 = vmatprep.subr.mxu0 0.0
    %2069 = vmatpush2.msra.mxu0 0.0
    %2070 = vmatprep.subr.mxu0 0.0
    %2071 = vmatpush2.msra.mxu0 0.0
    %2072 = vmatprep.subr.mxu0 0.0
    %2073 = vmatpush2.msra.mxu0 0.0
    %2074 = vmatprep.subr.mxu0 0.0
    %2075 = vmatpush2.msra.mxu0 0.0
    %2076 = vmatprep.subr.mxu0 0.0
    %2077 = vmatpush2.msra.mxu0 0.0
    %2078 = vmatprep.subr.mxu0 0.0
    %2079 = vmatpush2.msra.mxu0 0.0
    %2080 = vmatprep.subr.mxu0 0.0
    %2081 = vmatpush2.msra.mxu0 0.0
    %2082 = vmatprep.subr.mxu0 0.0
    %2083 = vmatpush2.msra.mxu0 0.0
    %2084 = vmatprep.subr.mxu0 0.0
    %2085 = vmatpush2.msra.mxu0 0.0
    %2086 = vmatprep.subr.mxu0 0.0
    %2087 = vmatpush2.msra.mxu0 0.0
    %2088 = vmatprep.subr.mxu0 0.0
    %2089 = vmatpush2.msra.mxu0 0.0
    %2090 = vmatprep.subr.mxu0 0.0
    %2091 = vmatpush2.msra.mxu0 0.0
    %2092 = vmatprep.subr.mxu0 0.0
    %2093 = vmatpush2.msra.mxu0 0.0
    %2094 = vmatprep.subr.mxu0 0.0
    %2095 = vmatpush2.msra.mxu0 0.0
    %2096 = vmatprep.subr.mxu0 0.0
    %2097 = vmatpush2.msra.mxu0 0.0
    %2098 = vmatprep.mubr.f32.mxu0 0.0
    %v2099 = vand.u32 %v2028, 4294901760
    %v2100 = vsub.f32 %v2028, %v2099
    %v2101 = vand.u32 %v2100, 4294901760
    %v2102 = vsub.f32 %v2100, %v2101
    %v2103 = vand.u32 %v2102, 4294901760
    %2104 = vmatmul.mubr.f32.gmra.mxu0 %v2103
    %v2105 = vpop.f32.mrf.mxu0
    %v2106 = vadd.f32 0.0, %v2105
    %v2107 = vpop.f32.mrf.mxu0
    %v2108 = vadd.f32 0.0, %v2107
    %2109 = vdwg.mxu0
    %2110 = vmatprep.subr.mxu0 0.0
    %2111 = vmatpush1.msra.mxu0 0.0
    %2112 = vmatprep.subr.mxu0 0.0
    %2113 = vmatpush1.msra.mxu0 0.0
    %2114 = vmatprep.subr.mxu0 0.0
    %2115 = vmatpush1.msra.mxu0 0.0
    %2116 = vmatprep.subr.mxu0 0.0
    %2117 = vmatpush1.msra.mxu0 0.0
    %2118 = vmatprep.subr.mxu0 0.0
    %2119 = vmatpush1.msra.mxu0 0.0
    %2120 = vmatprep.subr.mxu0 0.0
    %2121 = vmatpush1.msra.mxu0 0.0
    %2122 = vmatprep.subr.mxu0 0.0
    %2123 = vmatpush1.msra.mxu0 0.0
    %2124 = vmatprep.subr.mxu0 0.0
    %2125 = vmatpush1.msra.mxu0 0.0
    %2126 = vmatprep.subr.mxu0 0.0
    %2127 = vmatpush1.msra.mxu0 0.0
    %2128 = vmatprep.subr.mxu0 0.0
    %2129 = vmatpush1.msra.mxu0 0.0
    %2130 = vmatprep.subr.mxu0 0.0
    %2131 = vmatpush1.msra.mxu0 0.0
    %2132 = vmatprep.subr.mxu0 0.0
    %2133 = vmatpush1.msra.mxu0 0.0
    %2134 = vmatprep.subr.mxu0 0.0
    %2135 = vmatpush1.msra.mxu0 0.0
    %2136 = vmatprep.subr.mxu0 0.0
    %2137 = vmatpush1.msra.mxu0 0.0
    %v2138 = vand.u32 %v2026, 4294901760
    %v2139 = vsub.f32 %v2026, %v2138
    %v2140 = vand.u32 %v2139, 4294901760
    %v2141 = vsub.f32 %v2139, %v2140
    %v2142 = vand.u32 %v2141, 4294901760
    %2143 = vmatprep.subr.mxu0 %v2142
    %v2144 = vand.u32 %v2025, 4294901760
    %v2145 = vsub.f32 %v2025, %v2144
    %v2146 = vand.u32 %v2145, 4294901760
    %v2147 = vsub.f32 %v2145, %v2146
    %v2148 = vand.u32 %v2147, 4294901760
    %2149 = vmatpush1.msra.mxu0 %v2148
    %v2150 = vand.u32 %v2024, 4294901760
    %v2151 = vsub.f32 %v2024, %v2150
    %v2152 = vand.u32 %v2151, 4294901760
    %v2153 = vsub.f32 %v2151, %v2152
    %v2154 = vand.u32 %v2153, 4294901760
    %2155 = vmatprep.subr.mxu0 %v2154
    %v2156 = vand.u32 %v2023, 4294901760
    %v2157 = vsub.f32 %v2023, %v2156
    %v2158 = vand.u32 %v2157, 4294901760
    %v2159 = vsub.f32 %v2157, %v2158
    %v2160 = vand.u32 %v2159, 4294901760
    %2161 = vmatpush1.msra.mxu0 %v2160
    %2162 = vmatprep.subr.mxu0 0.0
    %2163 = vmatpush2.msra.mxu0 0.0
    %2164 = vmatprep.subr.mxu0 0.0
    %2165 = vmatpush2.msra.mxu0 0.0
    %2166 = vmatprep.subr.mxu0 0.0
    %2167 = vmatpush2.msra.mxu0 0.0
    %2168 = vmatprep.subr.mxu0 0.0
    %2169 = vmatpush2.msra.mxu0 0.0
    %2170 = vmatprep.subr.mxu0 0.0
    %2171 = vmatpush2.msra.mxu0 0.0
    %2172 = vmatprep.subr.mxu0 0.0
    %2173 = vmatpush2.msra.mxu0 0.0
    %2174 = vmatprep.subr.mxu0 0.0
    %2175 = vmatpush2.msra.mxu0 0.0
    %2176 = vmatprep.subr.mxu0 0.0
    %2177 = vmatpush2.msra.mxu0 0.0
    %2178 = vmatprep.subr.mxu0 0.0
    %2179 = vmatpush2.msra.mxu0 0.0
    %2180 = vmatprep.subr.mxu0 0.0
    %2181 = vmatpush2.msra.mxu0 0.0
    %2182 = vmatprep.subr.mxu0 0.0
    %2183 = vmatpush2.msra.mxu0 0.0
    %2184 = vmatprep.subr.mxu0 0.0
    %2185 = vmatpush2.msra.mxu0 0.0
    %2186 = vmatprep.subr.mxu0 0.0
    %2187 = vmatpush2.msra.mxu0 0.0
    %2188 = vmatprep.subr.mxu0 0.0
    %2189 = vmatpush2.msra.mxu0 0.0
    %2190 = vmatprep.subr.mxu0 0.0
    %2191 = vmatpush2.msra.mxu0 0.0
    %2192 = vmatprep.subr.mxu0 0.0
    %2193 = vmatpush2.msra.mxu0 0.0
    %2194 = vmatprep.mubr.f32.mxu0 0.0
    %v2195 = vand.u32 %v2028, 4294901760
    %2196 = vmatmul.mubr.f32.gmra.mxu0 %v2195
    %v2197 = vpop.f32.mrf.mxu0
    %v2198 = vadd.f32 %v2106, %v2197
    %v2199 = vpop.f32.mrf.mxu0
    %v2200 = vadd.f32 %v2108, %v2199
    %2201 = vdwg.mxu0
    %2202 = vmatprep.subr.mxu0 0.0
    %2203 = vmatpush1.msra.mxu0 0.0
    %2204 = vmatprep.subr.mxu0 0.0
    %2205 = vmatpush1.msra.mxu0 0.0
    %2206 = vmatprep.subr.mxu0 0.0
    %2207 = vmatpush1.msra.mxu0 0.0
    %2208 = vmatprep.subr.mxu0 0.0
    %2209 = vmatpush1.msra.mxu0 0.0
    %2210 = vmatprep.subr.mxu0 0.0
    %2211 = vmatpush1.msra.mxu0 0.0
    %2212 = vmatprep.subr.mxu0 0.0
    %2213 = vmatpush1.msra.mxu0 0.0
    %2214 = vmatprep.subr.mxu0 0.0
    %2215 = vmatpush1.msra.mxu0 0.0
    %2216 = vmatprep.subr.mxu0 0.0
    %2217 = vmatpush1.msra.mxu0 0.0
    %2218 = vmatprep.subr.mxu0 0.0
    %2219 = vmatpush1.msra.mxu0 0.0
    %2220 = vmatprep.subr.mxu0 0.0
    %2221 = vmatpush1.msra.mxu0 0.0
    %2222 = vmatprep.subr.mxu0 0.0
    %2223 = vmatpush1.msra.mxu0 0.0
    %2224 = vmatprep.subr.mxu0 0.0
    %2225 = vmatpush1.msra.mxu0 0.0
    %2226 = vmatprep.subr.mxu0 0.0
    %2227 = vmatpush1.msra.mxu0 0.0
    %2228 = vmatprep.subr.mxu0 0.0
    %2229 = vmatpush1.msra.mxu0 0.0
    %v2230 = vand.u32 %v2026, 4294901760
    %v2231 = vsub.f32 %v2026, %v2230
    %2232 = vmatprep.subr.mxu0 %v2231
    %v2233 = vand.u32 %v2025, 4294901760
    %v2234 = vsub.f32 %v2025, %v2233
    %2235 = vmatpush1.msra.mxu0 %v2234
    %v2236 = vand.u32 %v2024, 4294901760
    %v2237 = vsub.f32 %v2024, %v2236
    %2238 = vmatprep.subr.mxu0 %v2237
    %v2239 = vand.u32 %v2023, 4294901760
    %v2240 = vsub.f32 %v2023, %v2239
    %2241 = vmatpush1.msra.mxu0 %v2240
    %2242 = vmatprep.subr.mxu0 0.0
    %2243 = vmatpush2.msra.mxu0 0.0
    %2244 = vmatprep.subr.mxu0 0.0
    %2245 = vmatpush2.msra.mxu0 0.0
    %2246 = vmatprep.subr.mxu0 0.0
    %2247 = vmatpush2.msra.mxu0 0.0
    %2248 = vmatprep.subr.mxu0 0.0
    %2249 = vmatpush2.msra.mxu0 0.0
    %2250 = vmatprep.subr.mxu0 0.0
    %2251 = vmatpush2.msra.mxu0 0.0
    %2252 = vmatprep.subr.mxu0 0.0
    %2253 = vmatpush2.msra.mxu0 0.0
    %2254 = vmatprep.subr.mxu0 0.0
    %2255 = vmatpush2.msra.mxu0 0.0
    %2256 = vmatprep.subr.mxu0 0.0
    %2257 = vmatpush2.msra.mxu0 0.0
    %2258 = vmatprep.subr.mxu0 0.0
    %2259 = vmatpush2.msra.mxu0 0.0
    %2260 = vmatprep.subr.mxu0 0.0
    %2261 = vmatpush2.msra.mxu0 0.0
    %2262 = vmatprep.subr.mxu0 0.0
    %2263 = vmatpush2.msra.mxu0 0.0
    %2264 = vmatprep.subr.mxu0 0.0
    %2265 = vmatpush2.msra.mxu0 0.0
    %2266 = vmatprep.subr.mxu0 0.0
    %2267 = vmatpush2.msra.mxu0 0.0
    %2268 = vmatprep.subr.mxu0 0.0
    %2269 = vmatpush2.msra.mxu0 0.0
    %2270 = vmatprep.subr.mxu0 0.0
    %2271 = vmatpush2.msra.mxu0 0.0
    %2272 = vmatprep.subr.mxu0 0.0
    %2273 = vmatpush2.msra.mxu0 0.0
    %2274 = vmatprep.mubr.f32.mxu0 0.0
    %v2275 = vand.u32 %v2028, 4294901760
    %v2276 = vsub.f32 %v2028, %v2275
    %2277 = vmatmul.mubr.f32.gmra.mxu0 %v2276
    %v2278 = vpop.f32.mrf.mxu0
    %v2279 = vadd.f32 %v2198, %v2278
    %v2280 = vpop.f32.mrf.mxu0
    %v2281 = vadd.f32 %v2200, %v2280
    %2282 = vdwg.mxu0
    %2283 = vmatprep.subr.mxu0 0.0
    %2284 = vmatpush1.msra.mxu0 0.0
    %2285 = vmatprep.subr.mxu0 0.0
    %2286 = vmatpush1.msra.mxu0 0.0
    %2287 = vmatprep.subr.mxu0 0.0
    %2288 = vmatpush1.msra.mxu0 0.0
    %2289 = vmatprep.subr.mxu0 0.0
    %2290 = vmatpush1.msra.mxu0 0.0
    %2291 = vmatprep.subr.mxu0 0.0
    %2292 = vmatpush1.msra.mxu0 0.0
    %2293 = vmatprep.subr.mxu0 0.0
    %2294 = vmatpush1.msra.mxu0 0.0
    %2295 = vmatprep.subr.mxu0 0.0
    %2296 = vmatpush1.msra.mxu0 0.0
    %2297 = vmatprep.subr.mxu0 0.0
    %2298 = vmatpush1.msra.mxu0 0.0
    %2299 = vmatprep.subr.mxu0 0.0
    %2300 = vmatpush1.msra.mxu0 0.0
    %2301 = vmatprep.subr.mxu0 0.0
    %2302 = vmatpush1.msra.mxu0 0.0
    %2303 = vmatprep.subr.mxu0 0.0
    %2304 = vmatpush1.msra.mxu0 0.0
    %2305 = vmatprep.subr.mxu0 0.0
    %2306 = vmatpush1.msra.mxu0 0.0
    %2307 = vmatprep.subr.mxu0 0.0
    %2308 = vmatpush1.msra.mxu0 0.0
    %2309 = vmatprep.subr.mxu0 0.0
    %2310 = vmatpush1.msra.mxu0 0.0
    %v2311 = vand.u32 %v2026, 4294901760
    %2312 = vmatprep.subr.mxu0 %v2311
    %v2313 = vand.u32 %v2025, 4294901760
    %2314 = vmatpush1.msra.mxu0 %v2313
    %v2315 = vand.u32 %v2024, 4294901760
    %2316 = vmatprep.subr.mxu0 %v2315
    %v2317 = vand.u32 %v2023, 4294901760
    %2318 = vmatpush1.msra.mxu0 %v2317
    %2319 = vmatprep.subr.mxu0 0.0
    %2320 = vmatpush2.msra.mxu0 0.0
    %2321 = vmatprep.subr.mxu0 0.0
    %2322 = vmatpush2.msra.mxu0 0.0
    %2323 = vmatprep.subr.mxu0 0.0
    %2324 = vmatpush2.msra.mxu0 0.0
    %2325 = vmatprep.subr.mxu0 0.0
    %2326 = vmatpush2.msra.mxu0 0.0
    %2327 = vmatprep.subr.mxu0 0.0
    %2328 = vmatpush2.msra.mxu0 0.0
    %2329 = vmatprep.subr.mxu0 0.0
    %2330 = vmatpush2.msra.mxu0 0.0
    %2331 = vmatprep.subr.mxu0 0.0
    %2332 = vmatpush2.msra.mxu0 0.0
    %2333 = vmatprep.subr.mxu0 0.0
    %2334 = vmatpush2.msra.mxu0 0.0
    %2335 = vmatprep.subr.mxu0 0.0
    %2336 = vmatpush2.msra.mxu0 0.0
    %2337 = vmatprep.subr.mxu0 0.0
    %2338 = vmatpush2.msra.mxu0 0.0
    %2339 = vmatprep.subr.mxu0 0.0
    %2340 = vmatpush2.msra.mxu0 0.0
    %2341 = vmatprep.subr.mxu0 0.0
    %2342 = vmatpush2.msra.mxu0 0.0
    %2343 = vmatprep.subr.mxu0 0.0
    %2344 = vmatpush2.msra.mxu0 0.0
    %2345 = vmatprep.subr.mxu0 0.0
    %2346 = vmatpush2.msra.mxu0 0.0
    %2347 = vmatprep.subr.mxu0 0.0
    %2348 = vmatpush2.msra.mxu0 0.0
    %2349 = vmatprep.subr.mxu0 0.0
    %2350 = vmatpush2.msra.mxu0 0.0
    %2351 = vmatprep.mubr.f32.mxu0 0.0
    %v2352 = vand.u32 %v2028, 4294901760
    %v2353 = vsub.f32 %v2028, %v2352
    %v2354 = vand.u32 %v2353, 4294901760
    %2355 = vmatmul.mubr.f32.gmra.mxu0 %v2354
    %v2356 = vpop.f32.mrf.mxu0
    %v2357 = vadd.f32 %v2279, %v2356
    %v2358 = vpop.f32.mrf.mxu0
    %v2359 = vadd.f32 %v2281, %v2358
    %2360 = vdwg.mxu0
    %2361 = vmatprep.subr.mxu0 0.0
    %2362 = vmatpush1.msra.mxu0 0.0
    %2363 = vmatprep.subr.mxu0 0.0
    %2364 = vmatpush1.msra.mxu0 0.0
    %2365 = vmatprep.subr.mxu0 0.0
    %2366 = vmatpush1.msra.mxu0 0.0
    %2367 = vmatprep.subr.mxu0 0.0
    %2368 = vmatpush1.msra.mxu0 0.0
    %2369 = vmatprep.subr.mxu0 0.0
    %2370 = vmatpush1.msra.mxu0 0.0
    %2371 = vmatprep.subr.mxu0 0.0
    %2372 = vmatpush1.msra.mxu0 0.0
    %2373 = vmatprep.subr.mxu0 0.0
    %2374 = vmatpush1.msra.mxu0 0.0
    %2375 = vmatprep.subr.mxu0 0.0
    %2376 = vmatpush1.msra.mxu0 0.0
    %2377 = vmatprep.subr.mxu0 0.0
    %2378 = vmatpush1.msra.mxu0 0.0
    %2379 = vmatprep.subr.mxu0 0.0
    %2380 = vmatpush1.msra.mxu0 0.0
    %2381 = vmatprep.subr.mxu0 0.0
    %2382 = vmatpush1.msra.mxu0 0.0
    %2383 = vmatprep.subr.mxu0 0.0
    %2384 = vmatpush1.msra.mxu0 0.0
    %2385 = vmatprep.subr.mxu0 0.0
    %2386 = vmatpush1.msra.mxu0 0.0
    %2387 = vmatprep.subr.mxu0 0.0
    %2388 = vmatpush1.msra.mxu0 0.0
    %v2389 = vand.u32 %v2026, 4294901760
    %v2390 = vsub.f32 %v2026, %v2389
    %v2391 = vand.u32 %v2390, 4294901760
    %2392 = vmatprep.subr.mxu0 %v2391
    %v2393 = vand.u32 %v2025, 4294901760
    %v2394 = vsub.f32 %v2025, %v2393
    %v2395 = vand.u32 %v2394, 4294901760
    %2396 = vmatpush1.msra.mxu0 %v2395
    %v2397 = vand.u32 %v2024, 4294901760
    %v2398 = vsub.f32 %v2024, %v2397
    %v2399 = vand.u32 %v2398, 4294901760
    %2400 = vmatprep.subr.mxu0 %v2399
    %v2401 = vand.u32 %v2023, 4294901760
    %v2402 = vsub.f32 %v2023, %v2401
    %v2403 = vand.u32 %v2402, 4294901760
    %2404 = vmatpush1.msra.mxu0 %v2403
    %2405 = vmatprep.subr.mxu0 0.0
    %2406 = vmatpush2.msra.mxu0 0.0
    %2407 = vmatprep.subr.mxu0 0.0
    %2408 = vmatpush2.msra.mxu0 0.0
    %2409 = vmatprep.subr.mxu0 0.0
    %2410 = vmatpush2.msra.mxu0 0.0
    %2411 = vmatprep.subr.mxu0 0.0
    %2412 = vmatpush2.msra.mxu0 0.0
    %2413 = vmatprep.subr.mxu0 0.0
    %2414 = vmatpush2.msra.mxu0 0.0
    %2415 = vmatprep.subr.mxu0 0.0
    %2416 = vmatpush2.msra.mxu0 0.0
    %2417 = vmatprep.subr.mxu0 0.0
    %2418 = vmatpush2.msra.mxu0 0.0
    %2419 = vmatprep.subr.mxu0 0.0
    %2420 = vmatpush2.msra.mxu0 0.0
    %2421 = vmatprep.subr.mxu0 0.0
    %2422 = vmatpush2.msra.mxu0 0.0
    %2423 = vmatprep.subr.mxu0 0.0
    %2424 = vmatpush2.msra.mxu0 0.0
    %2425 = vmatprep.subr.mxu0 0.0
    %2426 = vmatpush2.msra.mxu0 0.0
    %2427 = vmatprep.subr.mxu0 0.0
    %2428 = vmatpush2.msra.mxu0 0.0
    %2429 = vmatprep.subr.mxu0 0.0
    %2430 = vmatpush2.msra.mxu0 0.0
    %2431 = vmatprep.subr.mxu0 0.0
    %2432 = vmatpush2.msra.mxu0 0.0
    %2433 = vmatprep.subr.mxu0 0.0
    %2434 = vmatpush2.msra.mxu0 0.0
    %2435 = vmatprep.subr.mxu0 0.0
    %2436 = vmatpush2.msra.mxu0 0.0
    %2437 = vmatprep.mubr.f32.mxu0 0.0
    %v2438 = vand.u32 %v2028, 4294901760
    %2439 = vmatmul.mubr.f32.gmra.mxu0 %v2438
    %v2440 = vpop.f32.mrf.mxu0
    %v2441 = vadd.f32 %v2357, %v2440
    %v2442 = vpop.f32.mrf.mxu0
    %v2443 = vadd.f32 %v2359, %v2442
    %2444 = vdwg.mxu0
    %2445 = vmatprep.subr.mxu0 0.0
    %2446 = vmatpush1.msra.mxu0 0.0
    %2447 = vmatprep.subr.mxu0 0.0
    %2448 = vmatpush1.msra.mxu0 0.0
    %2449 = vmatprep.subr.mxu0 0.0
    %2450 = vmatpush1.msra.mxu0 0.0
    %2451 = vmatprep.subr.mxu0 0.0
    %2452 = vmatpush1.msra.mxu0 0.0
    %2453 = vmatprep.subr.mxu0 0.0
    %2454 = vmatpush1.msra.mxu0 0.0
    %2455 = vmatprep.subr.mxu0 0.0
    %2456 = vmatpush1.msra.mxu0 0.0
    %2457 = vmatprep.subr.mxu0 0.0
    %2458 = vmatpush1.msra.mxu0 0.0
    %2459 = vmatprep.subr.mxu0 0.0
    %2460 = vmatpush1.msra.mxu0 0.0
    %2461 = vmatprep.subr.mxu0 0.0
    %2462 = vmatpush1.msra.mxu0 0.0
    %2463 = vmatprep.subr.mxu0 0.0
    %2464 = vmatpush1.msra.mxu0 0.0
    %2465 = vmatprep.subr.mxu0 0.0
    %2466 = vmatpush1.msra.mxu0 0.0
    %2467 = vmatprep.subr.mxu0 0.0
    %2468 = vmatpush1.msra.mxu0 0.0
    %2469 = vmatprep.subr.mxu0 0.0
    %2470 = vmatpush1.msra.mxu0 0.0
    %2471 = vmatprep.subr.mxu0 0.0
    %2472 = vmatpush1.msra.mxu0 0.0
    %v2473 = vand.u32 %v2026, 4294901760
    %2474 = vmatprep.subr.mxu0 %v2473
    %v2475 = vand.u32 %v2025, 4294901760
    %2476 = vmatpush1.msra.mxu0 %v2475
    %v2477 = vand.u32 %v2024, 4294901760
    %2478 = vmatprep.subr.mxu0 %v2477
    %v2479 = vand.u32 %v2023, 4294901760
    %2480 = vmatpush1.msra.mxu0 %v2479
    %2481 = vmatprep.subr.mxu0 0.0
    %2482 = vmatpush2.msra.mxu0 0.0
    %2483 = vmatprep.subr.mxu0 0.0
    %2484 = vmatpush2.msra.mxu0 0.0
    %2485 = vmatprep.subr.mxu0 0.0
    %2486 = vmatpush2.msra.mxu0 0.0
    %2487 = vmatprep.subr.mxu0 0.0
    %2488 = vmatpush2.msra.mxu0 0.0
    %2489 = vmatprep.subr.mxu0 0.0
    %2490 = vmatpush2.msra.mxu0 0.0
    %2491 = vmatprep.subr.mxu0 0.0
    %2492 = vmatpush2.msra.mxu0 0.0
    %2493 = vmatprep.subr.mxu0 0.0
    %2494 = vmatpush2.msra.mxu0 0.0
    %2495 = vmatprep.subr.mxu0 0.0
    %2496 = vmatpush2.msra.mxu0 0.0
    %2497 = vmatprep.subr.mxu0 0.0
    %2498 = vmatpush2.msra.mxu0 0.0
    %2499 = vmatprep.subr.mxu0 0.0
    %2500 = vmatpush2.msra.mxu0 0.0
    %2501 = vmatprep.subr.mxu0 0.0
    %2502 = vmatpush2.msra.mxu0 0.0
    %2503 = vmatprep.subr.mxu0 0.0
    %2504 = vmatpush2.msra.mxu0 0.0
    %2505 = vmatprep.subr.mxu0 0.0
    %2506 = vmatpush2.msra.mxu0 0.0
    %2507 = vmatprep.subr.mxu0 0.0
    %2508 = vmatpush2.msra.mxu0 0.0
    %2509 = vmatprep.subr.mxu0 0.0
    %2510 = vmatpush2.msra.mxu0 0.0
    %2511 = vmatprep.subr.mxu0 0.0
    %2512 = vmatpush2.msra.mxu0 0.0
    %2513 = vmatprep.mubr.f32.mxu0 0.0
    %v2514 = vand.u32 %v2028, 4294901760
    %2515 = vmatmul.mubr.f32.gmra.mxu0 %v2514
    %v2516 = vpop.f32.mrf.mxu0
    %v2517 = vadd.f32 %v2441, %v2516
    %v2518 = vpop.f32.mrf.mxu0
    %v2519 = vadd.f32 %v2443, %v2518
    %2520 = vdwg.mxu0
    %v2521 = vrsqrt.pop %v2517
    %v2522 = vmul.f32 %v2517, %v2521
    %vm2523 = vcmp.eq.f32.partialorder %v2517, inf
    %v2524 = vsel %vm2523, %v2517, %v2522
    %vm2525 = vcmp.eq.f32.partialorder %v2517, 0.0
    %v2526 = vand.u32 %v2517, 2147483648
    %v2527 = vsel %vm2525, %v2526, %v2524
    %v2528 = vrsqrt.pop %v2519
    %v2529 = vmul.f32 %v2519, %v2528
    %vm2530 = vcmp.eq.f32.partialorder %v2519, inf
    %v2531 = vsel %vm2530, %v2519, %v2529
    %vm2532 = vcmp.eq.f32.partialorder %v2519, 0.0
    %v2533 = vand.u32 %v2519, 2147483648
    %v2534 = vsel %vm2532, %v2533, %v2531
    %v2535 = vadd.f32 %v2527, 1e-06
    %v2536 = vadd.f32 %v2534, 1e-06
    %v2537 = vrcp.pop %v2535
    %v2538 = vmul.f32 %v2019, %v2537
    %v2539 = vrcp.pop %v2536
    %v2540 = vmul.f32 %v2021, %v2539
    %v2543 = vcombine.low %v2538, %v2540
    %v2545 = vunpack.c.l.s4 1966171168
    %v2546 = vunpack.c.0.s8 %v2545
    %v2547 = vlaneseq
    %v2548 = vshrl.u32 %v2547, 7
    %v2549 = vsub.s32 %v2546, %v2548
    %v2550 = vrot.slane %v2543, %v2549
    %v2552 = vunpack.c.l.s4 1966171168
    %v2553 = vunpack.c.0.s8 %v2552
    %v2554 = vlaneseq
    %v2555 = vshrl.u32 %v2554, 7
    %v2556 = vsub.s32 %v2553, %v2555
    %v2557 = vrot.slane %v2550, %v2556
    %v2559 = vlaneseq
    %vm2560 = vcmp.ge.s32.totalorder %v2559, 0
    %vm2561 = vcmp.lt.s32.totalorder %v2559, 256
    %vm2562 = vmand %vm2560, %vm2561
    %2563 = vst.msk [vmem:[#allocation2] sm:$0x3] %vm2562, %v2557
    // Predicated region
    $region34: #{d_mlp_norm_forward_fm.1} parent=1 // pred_check
      _
    $region35: #{d_mlp_norm_forward_fm.1} parent=1 // pred_check_branch
      %2565 = sbr.rel (0) target = $region37
    $region36: #{d_mlp_norm_forward_fm.1} parent=1 // pred_region
      %s2567 = ssub.s32 32, 32
      %2568 = vsyncadd [#allocation3], %s2567
      %s2570 = sshll.u32 [#allocation2], 4
      %s2571 = int_to_ptr.vmem [resolvable:$true] %s2570
      %2573 = dma.vmem_to_hbm [thread:$0]  %s2571, 32, %s8, [#allocation3]
    $region37: #{d_mlp_norm_forward_fm.1} parent=1 // pred_fallthru
      _
    // Predicated region
    $region38: #{d_mlp_norm_forward_fm.1} parent=1 // pred_check
      _
    $region39: #{d_mlp_norm_forward_fm.1} parent=1 // pred_check_branch
      %2575 = sbr.rel (0) target = $region41
    $region40: #{d_mlp_norm_forward_fm.1} parent=1 // pred_region
      %2576 = dma.done [#allocation3], 32
    $region41: #{d_mlp_norm_forward_fm.1} parent=1 // pred_fallthru
      _
    %2577 = vsyncpa [#allocation3], 1

</llo_original>
